<compile_context>
chip_gen: v7x
topology: tpu7x:2x2x1
jax: 0.10.0
libtpu: 0.0.40
codegen_flags: <defaults>
</compile_context>

<pallas_src>
import functools

import jax
import jax.numpy as jnp
import numpy as np
from jax.experimental import pallas as pl
from jax.experimental.pallas import tpu as pltpu


def rnd8(n):
    return ((n + 7) // 8) * 8


# ----------------------------------------------------------------------------
# Static row layout of the packed weight slab (256 lanes wide):
#   lanes   0:128 -> t_net weights,  lanes 128:256 -> y_net weights
# ----------------------------------------------------------------------------
OFF_W1 = 0      # 128 rows: t-net W1 (rows 0:v_dim) | y-net W1[x-cols] (rows v8:v8+x_dim)
OFF_B1 = 128    # row: [t-net b1 | y-net b1]
OFF_W1T = 130   # row: [0 | y-net W1 t-column] (even offset -> bf16 sublane aligned)
OFF_W2 = 136    # 128 rows: [t-net W2 (128x64) | y-net W2 (128x64)]
OFF_B2 = 264
OFF_W3 = 272    # 128 rows: [t-net W3 (64x32) | y-net W3 (64x32)]
OFF_B3 = 400
OFF_W4 = 408    # 128 rows: [t-net W4 (32x2)  | y-net W4 (32x1)]
OFF_B4 = 536
R_ROWS = 544    # total rows (multiple of 8)


# ----------------------------------------------------------------------------
# Weight packing (done once, outside the forward).
# ----------------------------------------------------------------------------
def pack_onesiv_params(t_params, y_params, v_dim, x_dim, dtype=jnp.bfloat16):
    tw1, tb1, tw2, tb2, tw3, tb3, tw4, tb4 = [jnp.asarray(a, jnp.float32) for a in t_params]
    yw1, yb1, yw2, yb2, yw3, yb3, yw4, yb4 = [jnp.asarray(a, jnp.float32) for a in y_params]
    v8, x8 = rnd8(v_dim), rnd8(x_dim)
    if v8 + x8 > 128:
        # TODO(synk): support v8 + x8 > 128 by widening the input slab to 256 lanes.
        raise ValueError("v_dim + x_dim too large for the fused 128-lane input slab")

    P = jnp.zeros((R_ROWS, 256), jnp.float32)
    # Fused layer 1: t-net W1 sees v (input lanes 0:v_dim), y-net W1[x-cols]
    # sees x (input lanes v8:v8+x_dim); the t-column of y-net W1 is folded in
    # separately as an additive row (t=1 branch).
    P = P.at[OFF_W1:OFF_W1 + v_dim, 0:128].set(tw1)
    P = P.at[OFF_W1 + v8:OFF_W1 + v8 + x_dim, 128:256].set(yw1[1:, :])
    P = P.at[OFF_B1, 0:128].set(tb1.reshape(-1))
    P = P.at[OFF_B1, 128:256].set(yb1.reshape(-1))
    P = P.at[OFF_W1T, 128:256].set(yw1[0, :])

    def put(P, off, tmat, ymat):
        tr, tc = tmat.shape
        yr, yc = ymat.shape
        P = P.at[off:off + tr, 0:tc].set(tmat)
        P = P.at[off:off + yr, 128:128 + yc].set(ymat)
        return P

    P = put(P, OFF_W2, tw2, yw2)
    P = put(P, OFF_B2, tb2, yb2)
    P = put(P, OFF_W3, tw3, yw3)
    P = put(P, OFF_B3, tb3, yb3)
    P = put(P, OFF_W4, tw4, yw4)
    P = put(P, OFF_B4, tb4, yb4)
    return P.astype(dtype)


# ----------------------------------------------------------------------------
# Pallas kernel (static batch-tile size and dtype baked in via closure).
# ----------------------------------------------------------------------------
def make_onesiv_kernel(bt, dtype):
    f32 = jnp.float32

    def kernel(in_ref, w_ref, out_ref, hy_ref):
        def dense(h, w_off, b_off, col0, relu=True):
            w = w_ref[w_off:w_off + 128, col0:col0 + 128]
            b = w_ref[b_off:b_off + 1, col0:col0 + 128].astype(f32)
            o = jnp.dot(h.astype(dtype), w, preferred_element_type=f32) + b
            return jnp.maximum(o, 0.0) if relu else o

        # ---- fused layer 1: one (bt,128) @ (128,256) dot for both nets ----
        xin = in_ref[...]                                           # (bt,128) dtype
        w1 = w_ref[OFF_W1:OFF_W1 + 128, :]                          # (128,256)
        b1 = w_ref[OFF_B1:OFF_B1 + 1, :].astype(f32)                # (1,256)
        w1t = w_ref[OFF_W1T:OFF_W1T + 1, 128:256].astype(f32)       # (1,128)
        h1 = jnp.dot(xin, w1, preferred_element_type=f32) + b1      # (bt,256) f32

        ht = jnp.maximum(h1[:, 0:128], 0.0)                         # t-net layer-1 out
        hx = h1[:, 128:256]                                         # y-net pre-act (t folded out)
        # stacked y-net activation written directly into VMEM scratch (no concat)
        hy_ref[0:bt, :] = jnp.maximum(hx, 0.0).astype(dtype)        # t = 0 branch
        hy_ref[bt:2 * bt, :] = jnp.maximum(hx + w1t, 0.0).astype(dtype)  # t = 1 branch

        # ---- t-net layers 2-4 (lanes 0:128 of the weight slab) ----
        ht = dense(ht, OFF_W2, OFF_B2, 0)
        ht = dense(ht, OFF_W3, OFF_B3, 0)
        pi_pad = dense(ht, OFF_W4, OFF_B4, 0, relu=False)           # (bt,128), cols 0:2 real

        # ---- y-net layers 2-4 on the stacked (2bt,128) activation ----
        hy = dense(hy_ref[...], OFF_W2, OFF_B2, 128)
        hy = dense(hy, OFF_W3, OFF_B3, 128)
        ylog = dense(hy, OFF_W4, OFF_B4, 128, relu=False)           # (2bt,128), col 0 real

        # ---- f32 epilogue: 2-logit softmax == sigmoid of the logit diff ----
        p1 = jax.nn.sigmoid(pi_pad[:, 1:2] - pi_pad[:, 0:1])
        p0 = 1.0 - p1
        y_0 = jax.nn.sigmoid(ylog[0:bt, 0:1]) + 0.0001              # loss == 'log'
        y_1 = jax.nn.sigmoid(ylog[bt:2 * bt, 0:1]) + 0.0001
        y = y_0 * p0 + y_1 * p1

        # ---- pack everything into one lane-dense (bt,128) output slab ----
        lane = jax.lax.broadcasted_iota(jnp.int32, (bt, 128), 1)
        out = pi_pad                               # lanes 0:2 = pi_t, rest zero
        out = jnp.where(lane == 2, y, out)
        out = jnp.where(lane == 3, y_0, out)
        out = jnp.where(lane == 4, y_1, out)
        out_ref[...] = out

    return kernel


# ----------------------------------------------------------------------------
# Wrapper: batch-gridded pallas_call, weights VMEM-resident, jit-cached.
# ----------------------------------------------------------------------------
@functools.partial(jax.jit, static_argnames=("block_rows",))
def onesiv_forward(v, x, t, w_pack, block_rows=512):
    # mode='v', eval: t only enters through the 0/1 column, folded into layer 1.
    B, v_dim = v.shape
    _, x_dim = x.shape
    v8, x8 = rnd8(v_dim), rnd8(x_dim)
    dtype = w_pack.dtype

    # Batch tile: multiple of 8, capped by block_rows, covering B with padding.
    bt = min(block_rows, max(8, rnd8(B)))
    n_tiles = (B + bt - 1) // bt
    B_pad = n_tiles * bt

    # One lane-dense (B_pad, 128) input slab: [ v | 0-pad | x | 0-pad ].
    in_slab = jnp.zeros((B_pad, 128), jnp.float32)
    in_slab = in_slab.at[:B, :v_dim].set(v)
    in_slab = in_slab.at[:B, v8:v8 + x_dim].set(x)
    in_slab = in_slab.astype(dtype)

    kernel = make_onesiv_kernel(bt, dtype)

    out = pl.pallas_call(
        kernel,
        out_shape=jax.ShapeDtypeStruct((B_pad, 128), jnp.float32),
        grid_spec=pltpu.PrefetchScalarGridSpec(
            num_scalar_prefetch=0,
            grid=(n_tiles,),
            in_specs=[
                pl.BlockSpec((bt, 128), lambda i: (i, 0)),       # input slab (pipelined)
                pl.BlockSpec((R_ROWS, 256), lambda i: (0, 0)),   # weights (VMEM-resident)
            ],
            out_specs=pl.BlockSpec((bt, 128), lambda i: (i, 0)),
            scratch_shapes=[pltpu.VMEM((2 * bt, 128), dtype)],   # stacked y-net activation
        ),
        compiler_params=pltpu.CompilerParams(
            dimension_semantics=("parallel",),        # megacore-shard batch tiles (v7x)
            vmem_limit_bytes=32 * 1024 * 1024,        # default bt=512 uses ~5 MiB
        ),
    )(in_slab, w_pack)

    pi_t = out[:B, 0:2]
    y = out[:B, 2:3]
    y_0 = out[:B, 3:4]
    y_1 = out[:B, 4:5]
    return pi_t, y, y_0, y_1


# ----------------------------------------------------------------------------
# Parameter construction (PyTorch nn.Linear default init, deterministic).
# ----------------------------------------------------------------------------
def init_linear(key, fan_in, fan_out):
    kw, kb = jax.random.split(key)
    bound = 1.0 / np.sqrt(fan_in)
    w = jax.random.uniform(kw, (fan_in, fan_out), jnp.float32, -bound, bound)
    b = jax.random.uniform(kb, (1, fan_out), jnp.float32, -bound, bound)
    return w, b


def init_mlp(key, dims):
    keys = jax.random.split(key, len(dims) - 1)
    params = []
    for k, din, dout in zip(keys, dims[:-1], dims[1:]):
        params.extend(init_linear(k, din, dout))
    return params  # [w1, b1, w2, b2, w3, b3, w4, b4]


# Pure-JAX reference for correctness checks (matches the PyTorch module).
def onesiv_reference(v, x, t, t_params, y_params):
    def mlp(h, p):
        w1, b1, w2, b2, w3, b3, w4, b4 = p
        h = jnp.maximum(h @ w1 + b1, 0.0)
        h = jnp.maximum(h @ w2 + b2, 0.0)
        h = jnp.maximum(h @ w3 + b3, 0.0)
        return h @ w4 + b4

    pi_t = mlp(v, t_params)                                   # mode == 'v'
    p_t = jax.nn.softmax(pi_t, axis=1)
    y0_in = jnp.concatenate([t - t, x], axis=1)
    y1_in = jnp.concatenate([t - t + 1.0, x], axis=1)
    y_0 = jax.nn.sigmoid(mlp(y0_in, y_params)) + 0.0001       # loss == 'log'
    y_1 = jax.nn.sigmoid(mlp(y1_in, y_params)) + 0.0001
    y = y_0 * p_t[:, 0:1] + y_1 * p_t[:, 1:2]
    return pi_t, y, y_0, y_1


if __name__ == "__main__":
    key = jax.random.PRNGKey(0)
    k_v, k_x, k_t, k_tnet, k_ynet = jax.random.split(key, 5)

    # mode='v' -> t_input_dim = v_dim, y_input_dim = x_dim + 1
    B, v_dim, x_dim = 200, 8, 7
    v = jax.random.normal(k_v, (B, v_dim), jnp.float32)
    x = jax.random.normal(k_x, (B, x_dim), jnp.float32)
    t = (jax.random.uniform(k_t, (B, 1)) > 0.5).astype(jnp.float32)

    t_params = init_mlp(k_tnet, [v_dim, 128, 64, 32, 2])
    y_params = init_mlp(k_ynet, [x_dim + 1, 128, 64, 32, 1])

    refs = onesiv_reference(v, x, t, t_params, y_params)

    # f32 path: exact check against the reference (block_rows=128 -> 2 grid tiles
    # + a padded final tile row range, exercising the pipeline and batch padding).
    wp_f32 = pack_onesiv_params(t_params, y_params, v_dim, x_dim, dtype=jnp.float32)
    outs_f32 = jax.block_until_ready(onesiv_forward(v, x, t, wp_f32, block_rows=128))
    for o, r in zip(outs_f32, refs):
        np.testing.assert_allclose(np.asarray(o), np.asarray(r), atol=1e-4, rtol=1e-4)

    # bf16 path (default for perf: bf16 MXU operands, f32 accumulation/epilogue).
    wp_bf16 = pack_onesiv_params(t_params, y_params, v_dim, x_dim, dtype=jnp.bfloat16)
    outs_bf16 = jax.block_until_ready(onesiv_forward(v, x, t, wp_bf16, block_rows=128))
    for o, r in zip(outs_bf16, refs):
        np.testing.assert_allclose(np.asarray(o), np.asarray(r), atol=5e-2, rtol=5e-2)

    print("KERNEL_OK")
</pallas_src>

<mosaic_0001>
module attributes {stable_mosaic.version = 11 : i64} {
  func.func @kernel(%arg0: i32, %arg1: memref<128x128xf32, #tpu.memory_space<vmem>>, %arg2: memref<544x256xf32, #tpu.memory_space<vmem>>, %arg3: memref<128x128xf32, #tpu.memory_space<vmem>>, %arg4: memref<256x128xf32, #tpu.memory_space<vmem>>) attributes {dimension_semantics = [#tpu.dimension_semantics<parallel>], iteration_bounds = array<i64: 2>, scalar_prefetch = 0 : i64, scratch_operands = 1 : i64, tpu.core_type = #tpu.core_type<tc>, window_params = [{transform_indices = @transform_0, window_bounds = array<i64: 128, 128>}, {pipeline_mode = #tpu.pipeline_mode<synchronous>, transform_indices = @transform_1, window_bounds = array<i64: 544, 256>}, {transform_indices = @transform_2, window_bounds = array<i64: 128, 128>}]} {
    %c0 = arith.constant 0 : index
    %c0_0 = arith.constant 0 : index
    %0 = vector.load %arg1[%c0, %c0_0] : memref<128x128xf32, #tpu.memory_space<vmem>>, vector<128x128xf32>
    %c0_1 = arith.constant 0 : index
    %c0_2 = arith.constant 0 : index
    %1 = vector.load %arg2[%c0_1, %c0_2] : memref<544x256xf32, #tpu.memory_space<vmem>>, vector<128x256xf32>
    %c128 = arith.constant 128 : index
    %c0_3 = arith.constant 0 : index
    %2 = vector.load %arg2[%c128, %c0_3] : memref<544x256xf32, #tpu.memory_space<vmem>>, vector<1x256xf32>
    %c130 = arith.constant 130 : index
    %c128_4 = arith.constant 128 : index
    %3 = vector.load %arg2[%c130, %c128_4] : memref<544x256xf32, #tpu.memory_space<vmem>>, vector<1x128xf32>
    %cst = arith.constant dense<0.000000e+00> : vector<128x256xf32>
    %4 = tpu.matmul %0, %1, %cst {dimension_numbers = #tpu.dot_dimension_numbers<[1], [0], [0], [1], [0, 0, 1, 1], [], []>} : vector<128x128xf32>, vector<128x256xf32>, vector<128x256xf32> -> vector<128x256xf32>
    %5 = vector.broadcast %2 : vector<1x256xf32> to vector<128x256xf32>
    %6 = arith.addf %4, %5 : vector<128x256xf32>
    %7 = vector.extract_strided_slice %6 {offsets = [0, 0], sizes = [128, 128], strides = [1, 1]} : vector<128x256xf32> to vector<128x128xf32>
    %cst_5 = arith.constant 0.000000e+00 : f32
    %8 = vector.broadcast %cst_5 : f32 to vector<128x128xf32>
    %9 = arith.maximumf %7, %8 : vector<128x128xf32>
    %10 = vector.extract_strided_slice %6 {offsets = [0, 128], sizes = [128, 128], strides = [1, 1]} : vector<128x256xf32> to vector<128x128xf32>
    %cst_6 = arith.constant 0.000000e+00 : f32
    %11 = vector.broadcast %cst_6 : f32 to vector<128x128xf32>
    %12 = arith.maximumf %10, %11 : vector<128x128xf32>
    %c0_7 = arith.constant 0 : index
    %c0_8 = arith.constant 0 : index
    %13 = vector.load %arg4[%c0_7, %c0_8] : memref<256x128xf32, #tpu.memory_space<vmem>>, vector<128x128xf32>
    tpu.vector_store %arg4[%c0_7, %c0_8], %12 {strides = array<i32>} : memref<256x128xf32, #tpu.memory_space<vmem>>, vector<128x128xf32>,
    %14 = vector.broadcast %3 : vector<1x128xf32> to vector<128x128xf32>
    %15 = arith.addf %10, %14 : vector<128x128xf32>
    %cst_9 = arith.constant 0.000000e+00 : f32
    %16 = vector.broadcast %cst_9 : f32 to vector<128x128xf32>
    %17 = arith.maximumf %15, %16 : vector<128x128xf32>
    %c128_10 = arith.constant 128 : index
    %c0_11 = arith.constant 0 : index
    %18 = vector.load %arg4[%c128_10, %c0_11] : memref<256x128xf32, #tpu.memory_space<vmem>>, vector<128x128xf32>
    tpu.vector_store %arg4[%c128_10, %c0_11], %17 {strides = array<i32>} : memref<256x128xf32, #tpu.memory_space<vmem>>, vector<128x128xf32>,
    %c136 = arith.constant 136 : index
    %c0_12 = arith.constant 0 : index
    %19 = vector.load %arg2[%c136, %c0_12] : memref<544x256xf32, #tpu.memory_space<vmem>>, vector<128x128xf32>
    %c264 = arith.constant 264 : index
    %c0_13 = arith.constant 0 : index
    %20 = vector.load %arg2[%c264, %c0_13] : memref<544x256xf32, #tpu.memory_space<vmem>>, vector<1x128xf32>
    %cst_14 = arith.constant dense<0.000000e+00> : vector<128x128xf32>
    %21 = tpu.matmul %9, %19, %cst_14 {dimension_numbers = #tpu.dot_dimension_numbers<[1], [0], [0], [1], [0, 0, 1, 1], [], []>} : vector<128x128xf32>, vector<128x128xf32>, vector<128x128xf32> -> vector<128x128xf32>
    %22 = vector.broadcast %20 : vector<1x128xf32> to vector<128x128xf32>
    %23 = arith.addf %21, %22 : vector<128x128xf32>
    %cst_15 = arith.constant 0.000000e+00 : f32
    %24 = vector.broadcast %cst_15 : f32 to vector<128x128xf32>
    %25 = arith.maximumf %23, %24 : vector<128x128xf32>
    %c272 = arith.constant 272 : index
    %c0_16 = arith.constant 0 : index
    %26 = vector.load %arg2[%c272, %c0_16] : memref<544x256xf32, #tpu.memory_space<vmem>>, vector<128x128xf32>
    %c400 = arith.constant 400 : index
    %c0_17 = arith.constant 0 : index
    %27 = vector.load %arg2[%c400, %c0_17] : memref<544x256xf32, #tpu.memory_space<vmem>>, vector<1x128xf32>
    %cst_18 = arith.constant dense<0.000000e+00> : vector<128x128xf32>
    %28 = tpu.matmul %25, %26, %cst_18 {dimension_numbers = #tpu.dot_dimension_numbers<[1], [0], [0], [1], [0, 0, 1, 1], [], []>} : vector<128x128xf32>, vector<128x128xf32>, vector<128x128xf32> -> vector<128x128xf32>
    %29 = vector.broadcast %27 : vector<1x128xf32> to vector<128x128xf32>
    %30 = arith.addf %28, %29 : vector<128x128xf32>
    %cst_19 = arith.constant 0.000000e+00 : f32
    %31 = vector.broadcast %cst_19 : f32 to vector<128x128xf32>
    %32 = arith.maximumf %30, %31 : vector<128x128xf32>
    %c408 = arith.constant 408 : index
    %c0_20 = arith.constant 0 : index
    %33 = vector.load %arg2[%c408, %c0_20] : memref<544x256xf32, #tpu.memory_space<vmem>>, vector<128x128xf32>
    %c536 = arith.constant 536 : index
    %c0_21 = arith.constant 0 : index
    %34 = vector.load %arg2[%c536, %c0_21] : memref<544x256xf32, #tpu.memory_space<vmem>>, vector<1x128xf32>
    %cst_22 = arith.constant dense<0.000000e+00> : vector<128x128xf32>
    %35 = tpu.matmul %32, %33, %cst_22 {dimension_numbers = #tpu.dot_dimension_numbers<[1], [0], [0], [1], [0, 0, 1, 1], [], []>} : vector<128x128xf32>, vector<128x128xf32>, vector<128x128xf32> -> vector<128x128xf32>
    %36 = vector.broadcast %34 : vector<1x128xf32> to vector<128x128xf32>
    %37 = arith.addf %35, %36 : vector<128x128xf32>
    %c0_23 = arith.constant 0 : index
    %c0_24 = arith.constant 0 : index
    %38 = vector.load %arg4[%c0_23, %c0_24] : memref<256x128xf32, #tpu.memory_space<vmem>>, vector<256x128xf32>
    %c136_25 = arith.constant 136 : index
    %c128_26 = arith.constant 128 : index
    %39 = vector.load %arg2[%c136_25, %c128_26] : memref<544x256xf32, #tpu.memory_space<vmem>>, vector<128x128xf32>
    %c264_27 = arith.constant 264 : index
    %c128_28 = arith.constant 128 : index
    %40 = vector.load %arg2[%c264_27, %c128_28] : memref<544x256xf32, #tpu.memory_space<vmem>>, vector<1x128xf32>
    %cst_29 = arith.constant dense<0.000000e+00> : vector<256x128xf32>
    %41 = tpu.matmul %38, %39, %cst_29 {dimension_numbers = #tpu.dot_dimension_numbers<[1], [0], [0], [1], [0, 0, 1, 1], [], []>} : vector<256x128xf32>, vector<128x128xf32>, vector<256x128xf32> -> vector<256x128xf32>
    %42 = vector.broadcast %40 : vector<1x128xf32> to vector<256x128xf32>
    %43 = arith.addf %41, %42 : vector<256x128xf32>
    %cst_30 = arith.constant 0.000000e+00 : f32
    %44 = vector.broadcast %cst_30 : f32 to vector<256x128xf32>
    %45 = arith.maximumf %43, %44 : vector<256x128xf32>
    %c272_31 = arith.constant 272 : index
    %c128_32 = arith.constant 128 : index
    %46 = vector.load %arg2[%c272_31, %c128_32] : memref<544x256xf32, #tpu.memory_space<vmem>>, vector<128x128xf32>
    %c400_33 = arith.constant 400 : index
    %c128_34 = arith.constant 128 : index
    %47 = vector.load %arg2[%c400_33, %c128_34] : memref<544x256xf32, #tpu.memory_space<vmem>>, vector<1x128xf32>
    %cst_35 = arith.constant dense<0.000000e+00> : vector<256x128xf32>
    %48 = tpu.matmul %45, %46, %cst_35 {dimension_numbers = #tpu.dot_dimension_numbers<[1], [0], [0], [1], [0, 0, 1, 1], [], []>} : vector<256x128xf32>, vector<128x128xf32>, vector<256x128xf32> -> vector<256x128xf32>
    %49 = vector.broadcast %47 : vector<1x128xf32> to vector<256x128xf32>
    %50 = arith.addf %48, %49 : vector<256x128xf32>
    %cst_36 = arith.constant 0.000000e+00 : f32
    %51 = vector.broadcast %cst_36 : f32 to vector<256x128xf32>
    %52 = arith.maximumf %50, %51 : vector<256x128xf32>
    %c408_37 = arith.constant 408 : index
    %c128_38 = arith.constant 128 : index
    %53 = vector.load %arg2[%c408_37, %c128_38] : memref<544x256xf32, #tpu.memory_space<vmem>>, vector<128x128xf32>
    %c536_39 = arith.constant 536 : index
    %c128_40 = arith.constant 128 : index
    %54 = vector.load %arg2[%c536_39, %c128_40] : memref<544x256xf32, #tpu.memory_space<vmem>>, vector<1x128xf32>
    %cst_41 = arith.constant dense<0.000000e+00> : vector<256x128xf32>
    %55 = tpu.matmul %52, %53, %cst_41 {dimension_numbers = #tpu.dot_dimension_numbers<[1], [0], [0], [1], [0, 0, 1, 1], [], []>} : vector<256x128xf32>, vector<128x128xf32>, vector<256x128xf32> -> vector<256x128xf32>
    %56 = vector.broadcast %54 : vector<1x128xf32> to vector<256x128xf32>
    %57 = arith.addf %55, %56 : vector<256x128xf32>
    %58 = vector.extract_strided_slice %37 {offsets = [0, 1], sizes = [128, 1], strides = [1, 1]} : vector<128x128xf32> to vector<128x1xf32>
    %59 = vector.extract_strided_slice %37 {offsets = [0, 0], sizes = [128, 1], strides = [1, 1]} : vector<128x128xf32> to vector<128x1xf32>
    %60 = arith.subf %58, %59 : vector<128x1xf32>
    %61 = arith.negf %60 : vector<128x1xf32>
    %62 = math.exp %61 : vector<128x1xf32>
    %cst_42 = arith.constant 1.000000e+00 : f32
    %63 = vector.broadcast %cst_42 : f32 to vector<128x1xf32>
    %64 = arith.addf %63, %62 : vector<128x1xf32>
    %65 = arith.divf %63, %64 : vector<128x1xf32>
    %cst_43 = arith.constant 1.000000e+00 : f32
    %66 = vector.broadcast %cst_43 : f32 to vector<128x1xf32>
    %67 = arith.subf %66, %65 : vector<128x1xf32>
    %68 = vector.extract_strided_slice %57 {offsets = [0, 0], sizes = [128, 1], strides = [1, 1]} : vector<256x128xf32> to vector<128x1xf32>
    %69 = arith.negf %68 : vector<128x1xf32>
    %70 = math.exp %69 : vector<128x1xf32>
    %cst_44 = arith.constant 1.000000e+00 : f32
    %71 = vector.broadcast %cst_44 : f32 to vector<128x1xf32>
    %72 = arith.addf %71, %70 : vector<128x1xf32>
    %73 = arith.divf %71, %72 : vector<128x1xf32>
    %cst_45 = arith.constant 9.99999974E-5 : f32
    %74 = vector.broadcast %cst_45 : f32 to vector<128x1xf32>
    %75 = arith.addf %73, %74 : vector<128x1xf32>
    %76 = vector.extract_strided_slice %57 {offsets = [128, 0], sizes = [128, 1], strides = [1, 1]} : vector<256x128xf32> to vector<128x1xf32>
    %77 = arith.negf %76 : vector<128x1xf32>
    %78 = math.exp %77 : vector<128x1xf32>
    %cst_46 = arith.constant 1.000000e+00 : f32
    %79 = vector.broadcast %cst_46 : f32 to vector<128x1xf32>
    %80 = arith.addf %79, %78 : vector<128x1xf32>
    %81 = arith.divf %79, %80 : vector<128x1xf32>
    %cst_47 = arith.constant 9.99999974E-5 : f32
    %82 = vector.broadcast %cst_47 : f32 to vector<128x1xf32>
    %83 = arith.addf %81, %82 : vector<128x1xf32>
    %84 = arith.mulf %75, %67 : vector<128x1xf32>
    %85 = arith.mulf %83, %65 : vector<128x1xf32>
    %86 = arith.addf %84, %85 : vector<128x1xf32>
    %87 = tpu.iota {dimensions = array<i32: 1>} : vector<128x128xi32>
    %c2_i32 = arith.constant 2 : i32
    %88 = vector.broadcast %c2_i32 : i32 to vector<128x128xi32>
    %89 = arith.cmpi eq, %87, %88 : vector<128x128xi32>
    %90 = vector.shape_cast %86 : vector<128x1xf32> to vector<128x1xf32>
    %91 = vector.broadcast %90 : vector<128x1xf32> to vector<128x128xf32>
    %92 = arith.select %89, %91, %37 : vector<128x128xi1>, vector<128x128xf32>
    %c3_i32 = arith.constant 3 : i32
    %93 = vector.broadcast %c3_i32 : i32 to vector<128x128xi32>
    %94 = arith.cmpi eq, %87, %93 : vector<128x128xi32>
    %95 = vector.shape_cast %75 : vector<128x1xf32> to vector<128x1xf32>
    %96 = vector.broadcast %95 : vector<128x1xf32> to vector<128x128xf32>
    %97 = arith.select %94, %96, %92 : vector<128x128xi1>, vector<128x128xf32>
    %c4_i32 = arith.constant 4 : i32
    %98 = vector.broadcast %c4_i32 : i32 to vector<128x128xi32>
    %99 = arith.cmpi eq, %87, %98 : vector<128x128xi32>
    %100 = vector.shape_cast %83 : vector<128x1xf32> to vector<128x1xf32>
    %101 = vector.broadcast %100 : vector<128x1xf32> to vector<128x128xf32>
    %102 = arith.select %99, %101, %97 : vector<128x128xi1>, vector<128x128xf32>
    %c0_48 = arith.constant 0 : index
    %c0_49 = arith.constant 0 : index
    %103 = vector.load %arg3[%c0_48, %c0_49] : memref<128x128xf32, #tpu.memory_space<vmem>>, vector<128x128xf32>
    tpu.vector_store %arg3[%c0_48, %c0_49], %102 {strides = array<i32>} : memref<128x128xf32, #tpu.memory_space<vmem>>, vector<128x128xf32>,
    return
  }
  func.func @transform_0(%arg0: i32) -> (i32, i32) {
    %c0_i32 = arith.constant 0 : i32
    %c0_i32_0 = arith.constant 0 : i32
    return %arg0, %c0_i32 : i32, i32
  }
  func.func @transform_1(%arg0: i32) -> (i32, i32) {
    %c0_i32 = arith.constant 0 : i32
    %c0_i32_0 = arith.constant 0 : i32
    %c0_i32_1 = arith.constant 0 : i32
    return %c0_i32, %c0_i32_0 : i32, i32
  }
  func.func @transform_2(%arg0: i32) -> (i32, i32) {
    %c0_i32 = arith.constant 0 : i32
    %c0_i32_0 = arith.constant 0 : i32
    return %arg0, %c0_i32 : i32, i32
  }
}

</mosaic_0001>

<llo_original>
// kernel: onesiv_forward.1
$region0: #{onesiv_forward.1}
  #allocation0 [shape = 'u32[]', space=smem, size = 0x4, offset = 0x4, fixed_abs, tag = 'smem constant byte address 0x4 - core index']
  #allocation1 [shape = 'u32[144,128]{1,0:T(1,128)}', space=vmem, size = 0x12000, scoped, tag = 'internal scratch']
  #allocation2 [shape = 'f32[256,128]{1,0:T(8,128)}', space=vmem, size = 0x20000, scoped, tag = 'scratch operand']
  %s0 = inlined_call_operand.vmem [shape: f32[256,128], index: 0, kind: input, shape index: {}]
  %s1 = inlined_call_operand.vmem [shape: f32[544,256], index: 1, kind: input, shape index: {}]
  %s2 = inlined_call_operand.vmem [shape: f32[256,128], index: 2, kind: output, shape index: {}]
  %s3 = sld [smem:[#allocation0]]
  $region41: #{onesiv_forward.1} parent=0
    _
  %s5 = ssub.s32 1, %s3
  %s6 = scalar_select 0, %s5, %s3
  loop: start=0, step=1, limit=4
  $region2: #{onesiv_forward.1} parent=0 // loop_pre_header
    _
  $region3: #{onesiv_forward.1} parent=0 // loop_header
    %s8 = sphi 0, %s12
    %p9 = scmp.ge.s32.totalorder %s8, 4
    %s18 = sphi 0, %s20
    %s21 = sphi 0, %s18
    %s22 = sphi 0, %s21
    %s38 = sphi 0, %s22
    %s42 = sphi 0, %s42
    %s44 = sphi 0, %s42
    %s45 = sphi 0, %s44
    %s59 = sphi 0, %s45
    %s65 = sphi 0, %s67
    %s68 = sphi 0, %s65
    %s69 = sphi 0, %s68
    %s85 = sphi 0, %s69
  $region4: #{onesiv_forward.1} parent=0 // loop_header_branch
    %11 = sbr.rel (%p9) target = $region8
  $region5: #{onesiv_forward.1} parent=0 // loop_body
    %s13 = ssub.s32 %s8, 1
    %s14 = ssub.s32 %s8, 2
    %s15 = sadd.s32 %s8, 1
    %s16 = ssub.s32 %s8, %s15
    %p17 = scmp.eq.s32.totalorder %s16, 0
    %s19 = sadd.s32 %s18, 1
    %s20 = scalar_select %p17, %s18, %s19
    %p23 = pneg %p17
    %p24 = scmp.eq.s32.totalorder %s8, 1
    %p25 = por %p23, %p24
    %p26 = scmp.ne.s32.totalorder %s18, %s21
    %p27 = scmp.eq.s32.totalorder %s8, 0
    %p28 = por %p26, %p27
    %p29 = scmp.ne.s32.totalorder %s18, %s21
    %p30 = scmp.eq.s32.totalorder %s13, 1
    %p31 = por %p29, %p30
    %p32 = scmp.ne.s32.totalorder %s21, %s22
    %p33 = scmp.eq.s32.totalorder %s13, 0
    %p34 = por %p32, %p33
    %p35 = scmp.ne.s32.totalorder %s21, %s22
    %p36 = scmp.eq.s32.totalorder %s14, 1
    %p37 = por %p35, %p36
    %p39 = scmp.ne.s32.totalorder %s22, %s38
    %p40 = scmp.eq.s32.totalorder %s14, 0
    %p41 = por %p39, %p40
    %s43 = sadd.s32 %s42, 1
    %p46 = scmp.eq.s32.totalorder %s8, 1
    %p47 = scmp.ne.s32.totalorder %s42, %s44
    %p48 = scmp.eq.s32.totalorder %s8, 0
    %p49 = por %p47, %p48
    %p50 = scmp.ne.s32.totalorder %s42, %s44
    %p51 = scmp.eq.s32.totalorder %s13, 1
    %p52 = por %p50, %p51
    %p53 = scmp.ne.s32.totalorder %s44, %s45
    %p54 = scmp.eq.s32.totalorder %s13, 0
    %p55 = por %p53, %p54
    %p56 = scmp.ne.s32.totalorder %s44, %s45
    %p57 = scmp.eq.s32.totalorder %s14, 1
    %p58 = por %p56, %p57
    %p60 = scmp.ne.s32.totalorder %s45, %s59
    %p61 = scmp.eq.s32.totalorder %s14, 0
    %p62 = por %p60, %p61
    %s63 = ssub.s32 %s8, %s15
    %p64 = scmp.eq.s32.totalorder %s63, 0
    %s66 = sadd.s32 %s65, 1
    %s67 = scalar_select %p64, %s65, %s66
    %p70 = pneg %p64
    %p71 = scmp.eq.s32.totalorder %s8, 1
    %p72 = por %p70, %p71
    %p73 = scmp.ne.s32.totalorder %s65, %s68
    %p74 = scmp.eq.s32.totalorder %s8, 0
    %p75 = por %p73, %p74
    %p76 = scmp.ne.s32.totalorder %s65, %s68
    %p77 = scmp.eq.s32.totalorder %s13, 1
    %p78 = por %p76, %p77
    %p79 = scmp.ne.s32.totalorder %s68, %s69
    %p80 = scmp.eq.s32.totalorder %s13, 0
    %p81 = por %p79, %p80
    %p82 = scmp.ne.s32.totalorder %s68, %s69
    %p83 = scmp.eq.s32.totalorder %s14, 1
    %p84 = por %p82, %p83
    %p86 = scmp.ne.s32.totalorder %s69, %s85
    %p87 = scmp.eq.s32.totalorder %s14, 0
    %p88 = por %p86, %p87
    %p89 = scmp.le.s32.totalorder 1, %s8
    %p90 = scmp.lt.s32.totalorder %s8, 3
    %p91 = pnand %p89, %p90
    %p92 = pneg %p91
    // Predicated region
    $region9: #{onesiv_forward.1} parent=5 // pred_check
      _
    $region10: #{onesiv_forward.1} parent=5 // pred_check_branch
      %94 = sbr.rel (%p91) target = $region12
    $region11: #{onesiv_forward.1} parent=5 // pred_region
      %s95 = ssub.s32 %s8, 1
      // Predicated region
      $region13: #{onesiv_forward.1} parent=11 // pred_check
        %p96 = pneg %p55
      $region14: #{onesiv_forward.1} parent=11 // pred_check_branch
        %98 = sbr.rel (%p96) target = $region16
      $region15: #{onesiv_forward.1} parent=11 // pred_region
        _
      $region16: #{onesiv_forward.1} parent=11 // pred_fallthru
        _
    $region12: #{onesiv_forward.1} parent=5 // pred_fallthru
      _
    %p99 = scmp.lt.s32.totalorder %s8, 2
    // Predicated region
    $region17: #{onesiv_forward.1} parent=5 // pred_check
      %p100 = pneg %p99
    $region18: #{onesiv_forward.1} parent=5 // pred_check_branch
      %102 = sbr.rel (%p100) target = $region20
    $region19: #{onesiv_forward.1} parent=5 // pred_region
      // Predicated region
      $region21: #{onesiv_forward.1} parent=19 // pred_check
        %p103 = pneg %p28
      $region22: #{onesiv_forward.1} parent=19 // pred_check_branch
        %105 = sbr.rel (%p103) target = $region24
      $region23: #{onesiv_forward.1} parent=19 // pred_region
        %s106 = smul.u32 16, %s8
        %p107 = scmp.lt.s32.totalorder %s106, 31
        %s108 = scalar_select %p107, %s106, 31
        %s109 = smul.addr %s108, 8
        %s110 = scalar_lea.vmem %s0, %s109
        %s111 = smul.u32 16, %s8
      $region24: #{onesiv_forward.1} parent=19 // pred_fallthru
        _
    $region20: #{onesiv_forward.1} parent=5 // pred_fallthru
      _
    %p112 = scmp.le.s32.totalorder 1, %s8
    %p113 = scmp.lt.s32.totalorder %s8, 3
    %p114 = pnand %p112, %p113
    %p115 = pneg %p114
    // Predicated region
    $region25: #{onesiv_forward.1} parent=5 // pred_check
      _
    $region26: #{onesiv_forward.1} parent=5 // pred_check_branch
      %117 = sbr.rel (%p114) target = $region28
    $region27: #{onesiv_forward.1} parent=5 // pred_region
      %s118 = ssub.s32 %s8, 1
      %s119 = smul.u32 16, %s13
      %p120 = scmp.lt.s32.totalorder %s119, 31
      %s121 = scalar_select %p120, %s119, 31
      %s122 = smul.addr %s121, 8
      %s123 = scalar_lea.vmem %s0, %s122
      %p124 = pneg %p34
      %p125 = pneg %p31
      %p126 = pneg %p55
      %p127 = pneg %p52
      %p128 = pneg %p81
      %p129 = pneg %p78
      %s130 = smul.u32 16, %s13
      %p131 = scmp.lt.s32.totalorder %s130, 31
      %s132 = scalar_select %p131, %s130, 31
      %s133 = smul.addr %s132, 8
      %s134 = scalar_lea.vmem %s2, %s133
      %s135 = smul.u32 16, %s13
      %p136 = scmp.lt.s32.totalorder %s135, 31
      %s137 = scalar_select %p136, %s135, 31
      %s138 = smul.addr %s137, 8
      %s139 = scalar_lea.vmem %s0, %s138
      %s140 = smul.u32 16, %s13
      %s141 = smul.u32 16, %s13
      %p142 = scmp.lt.s32.totalorder %s141, 31
      %s143 = scalar_select %p142, %s141, 31
      %s144 = smul.addr %s143, 8
      %s145 = scalar_lea.vmem %s2, %s144
      %s146 = smul.u32 16, %s13
      %v147 = vld [vmem:[%s139] sm:$0xff]
      %v148 = vld [vmem:[%s139 + $0x8] sm:$0xff]
      %v149 = vld [vmem:[%s139 + $0x10] sm:$0xff]
      %v150 = vld [vmem:[%s139 + $0x18] sm:$0xff]
      %v151 = vld [vmem:[%s139 + $0x20] sm:$0xff]
      %v152 = vld [vmem:[%s139 + $0x28] sm:$0xff]
      %v153 = vld [vmem:[%s139 + $0x30] sm:$0xff]
      %v154 = vld [vmem:[%s139 + $0x38] sm:$0xff]
      %v155 = vld [vmem:[%s139 + $0x40] sm:$0xff]
      %v156 = vld [vmem:[%s139 + $0x48] sm:$0xff]
      %v157 = vld [vmem:[%s139 + $0x50] sm:$0xff]
      %v158 = vld [vmem:[%s139 + $0x58] sm:$0xff]
      %v159 = vld [vmem:[%s139 + $0x60] sm:$0xff]
      %v160 = vld [vmem:[%s139 + $0x68] sm:$0xff]
      %v161 = vld [vmem:[%s139 + $0x70] sm:$0xff]
      %v162 = vld [vmem:[%s139 + $0x78] sm:$0xff]
      %v163 = vld [vmem:[%s1] sm:$0xff]
      %v164 = vld [vmem:[%s1 + $0x8] sm:$0xff]
      %v165 = vld [vmem:[%s1 + $0x10] sm:$0xff]
      %v166 = vld [vmem:[%s1 + $0x18] sm:$0xff]
      %v167 = vld [vmem:[%s1 + $0x20] sm:$0xff]
      %v168 = vld [vmem:[%s1 + $0x28] sm:$0xff]
      %v169 = vld [vmem:[%s1 + $0x30] sm:$0xff]
      %v170 = vld [vmem:[%s1 + $0x38] sm:$0xff]
      %v171 = vld [vmem:[%s1 + $0x40] sm:$0xff]
      %v172 = vld [vmem:[%s1 + $0x48] sm:$0xff]
      %v173 = vld [vmem:[%s1 + $0x50] sm:$0xff]
      %v174 = vld [vmem:[%s1 + $0x58] sm:$0xff]
      %v175 = vld [vmem:[%s1 + $0x60] sm:$0xff]
      %v176 = vld [vmem:[%s1 + $0x68] sm:$0xff]
      %v177 = vld [vmem:[%s1 + $0x70] sm:$0xff]
      %v178 = vld [vmem:[%s1 + $0x78] sm:$0xff]
      %v179 = vld [vmem:[%s1 + $0x80] sm:$0xff]
      %v180 = vld [vmem:[%s1 + $0x88] sm:$0xff]
      %v181 = vld [vmem:[%s1 + $0x90] sm:$0xff]
      %v182 = vld [vmem:[%s1 + $0x98] sm:$0xff]
      %v183 = vld [vmem:[%s1 + $0xa0] sm:$0xff]
      %v184 = vld [vmem:[%s1 + $0xa8] sm:$0xff]
      %v185 = vld [vmem:[%s1 + $0xb0] sm:$0xff]
      %v186 = vld [vmem:[%s1 + $0xb8] sm:$0xff]
      %v187 = vld [vmem:[%s1 + $0xc0] sm:$0xff]
      %v188 = vld [vmem:[%s1 + $0xc8] sm:$0xff]
      %v189 = vld [vmem:[%s1 + $0xd0] sm:$0xff]
      %v190 = vld [vmem:[%s1 + $0xd8] sm:$0xff]
      %v191 = vld [vmem:[%s1 + $0xe0] sm:$0xff]
      %v192 = vld [vmem:[%s1 + $0xe8] sm:$0xff]
      %v193 = vld [vmem:[%s1 + $0xf0] sm:$0xff]
      %v194 = vld [vmem:[%s1 + $0xf8] sm:$0xff]
      %s195 = scalar_lea.vmem %s1, 256
      %v196 = vld [vmem:[%s195] ss:$8 sm:$0x3]
      %v197 = vld [vmem:[%s1 + $0x10a] ss:$0 sm:$0xff]
      %v199 = vlaneseq
      %v200 = vshrl.u32 %v199, 7
      %v201 = vsub.s32 0, %v200
      %v202 = vrot.slane %v196, %v201
      %v203 = vlaneseq
      %v204 = vshrl.u32 %v203, 7
      %v205 = vsub.s32 1, %v204
      %v206 = vrot.slane %v196, %v205
      %209 = vmatprep.subr.mxu0 %v164
      %210 = vmatpush1.msra.mxu0 %v163
      %211 = vmatprep.subr.mxu0 %v166
      %212 = vmatpush1.msra.mxu0 %v165
      %213 = vmatprep.subr.mxu0 %v168
      %214 = vmatpush1.msra.mxu0 %v167
      %215 = vmatprep.subr.mxu0 %v170
      %216 = vmatpush1.msra.mxu0 %v169
      %217 = vmatprep.subr.mxu0 %v172
      %218 = vmatpush1.msra.mxu0 %v171
      %219 = vmatprep.subr.mxu0 %v174
      %220 = vmatpush1.msra.mxu0 %v173
      %221 = vmatprep.subr.mxu0 %v176
      %222 = vmatpush1.msra.mxu0 %v175
      %223 = vmatprep.subr.mxu0 %v178
      %224 = vmatpush1.msra.mxu0 %v177
      %225 = vmatprep.subr.mxu0 %v180
      %226 = vmatpush1.msra.mxu0 %v179
      %227 = vmatprep.subr.mxu0 %v182
      %228 = vmatpush1.msra.mxu0 %v181
      %229 = vmatprep.subr.mxu0 %v184
      %230 = vmatpush1.msra.mxu0 %v183
      %231 = vmatprep.subr.mxu0 %v186
      %232 = vmatpush1.msra.mxu0 %v185
      %233 = vmatprep.subr.mxu0 %v188
      %234 = vmatpush1.msra.mxu0 %v187
      %235 = vmatprep.subr.mxu0 %v190
      %236 = vmatpush1.msra.mxu0 %v189
      %237 = vmatprep.subr.mxu0 %v192
      %238 = vmatpush1.msra.mxu0 %v191
      %239 = vmatprep.subr.mxu0 %v194
      %240 = vmatpush1.msra.mxu0 %v193
      %241 = vmatprep.subr.mxu0 0.0
      %242 = vmatpush1.msra.mxu0 0.0
      %243 = vmatprep.subr.mxu0 0.0
      %244 = vmatpush1.msra.mxu0 0.0
      %245 = vmatprep.subr.mxu0 0.0
      %246 = vmatpush1.msra.mxu0 0.0
      %247 = vmatprep.subr.mxu0 0.0
      %248 = vmatpush1.msra.mxu0 0.0
      %249 = vmatprep.subr.mxu0 0.0
      %250 = vmatpush1.msra.mxu0 0.0
      %251 = vmatprep.subr.mxu0 0.0
      %252 = vmatpush1.msra.mxu0 0.0
      %253 = vmatprep.subr.mxu0 0.0
      %254 = vmatpush1.msra.mxu0 0.0
      %255 = vmatprep.subr.mxu0 0.0
      %256 = vmatpush1.msra.mxu0 0.0
      %257 = vmatprep.subr.mxu0 0.0
      %258 = vmatpush1.msra.mxu0 0.0
      %259 = vmatprep.subr.mxu0 0.0
      %260 = vmatpush1.msra.mxu0 0.0
      %261 = vmatprep.subr.mxu0 0.0
      %262 = vmatpush1.msra.mxu0 0.0
      %263 = vmatprep.subr.mxu0 0.0
      %264 = vmatpush1.msra.mxu0 0.0
      %265 = vmatprep.subr.mxu0 0.0
      %266 = vmatpush1.msra.mxu0 0.0
      %267 = vmatprep.subr.mxu0 0.0
      %268 = vmatpush1.msra.mxu0 0.0
      %269 = vmatprep.subr.mxu0 0.0
      %270 = vmatpush1.msra.mxu0 0.0
      %271 = vmatprep.subr.mxu0 0.0
      %272 = vmatpush1.msra.mxu0 0.0
      %273 = vmatprep.mubr.f32.mxu0 0.0
      %274 = vmatmul.mubr.f32.gmra.mrb[0].mxu0 %v147
      %v275 = vpop.f32.mrb[0].mxu0
      %v276 = vadd.f32 %v202, %v275
      %v277 = vpop.f32.mrb[0].mxu0
      %v278 = vadd.f32 %v206, %v277
      %279 = vmatprep.mubr.f32.mxu0 0.0
      %280 = vmatmul.mubr.f32.gmra.mrb[0].mxu0 %v148
      %v281 = vpop.f32.mrb[0].mxu0
      %v282 = vadd.f32 %v202, %v281
      %v283 = vpop.f32.mrb[0].mxu0
      %v284 = vadd.f32 %v206, %v283
      %285 = vmatprep.mubr.f32.mxu0 0.0
      %286 = vmatmul.mubr.f32.gmra.mrb[0].mxu0 %v149
      %v287 = vpop.f32.mrb[0].mxu0
      %v288 = vadd.f32 %v202, %v287
      %v289 = vpop.f32.mrb[0].mxu0
      %v290 = vadd.f32 %v206, %v289
      %291 = vmatprep.mubr.f32.mxu0 0.0
      %292 = vmatmul.mubr.f32.gmra.mrb[0].mxu0 %v150
      %v293 = vpop.f32.mrb[0].mxu0
      %v294 = vadd.f32 %v202, %v293
      %v295 = vpop.f32.mrb[0].mxu0
      %v296 = vadd.f32 %v206, %v295
      %297 = vmatprep.mubr.f32.mxu0 0.0
      %298 = vmatmul.mubr.f32.gmra.mrb[0].mxu0 %v151
      %v299 = vpop.f32.mrb[0].mxu0
      %v300 = vadd.f32 %v202, %v299
      %v301 = vpop.f32.mrb[0].mxu0
      %v302 = vadd.f32 %v206, %v301
      %303 = vmatprep.mubr.f32.mxu0 0.0
      %304 = vmatmul.mubr.f32.gmra.mrb[0].mxu0 %v152
      %v305 = vpop.f32.mrb[0].mxu0
      %v306 = vadd.f32 %v202, %v305
      %v307 = vpop.f32.mrb[0].mxu0
      %v308 = vadd.f32 %v206, %v307
      %309 = vmatprep.mubr.f32.mxu0 0.0
      %310 = vmatmul.mubr.f32.gmra.mrb[0].mxu0 %v153
      %v311 = vpop.f32.mrb[0].mxu0
      %v312 = vadd.f32 %v202, %v311
      %v313 = vpop.f32.mrb[0].mxu0
      %v314 = vadd.f32 %v206, %v313
      %315 = vmatprep.mubr.f32.mxu0 0.0
      %316 = vmatmul.mubr.f32.gmra.mrb[0].mxu0 %v154
      %v317 = vpop.f32.mrb[0].mxu0
      %v318 = vadd.f32 %v202, %v317
      %v319 = vpop.f32.mrb[0].mxu0
      %v320 = vadd.f32 %v206, %v319
      %321 = vmatprep.mubr.f32.mxu0 0.0
      %322 = vmatmul.mubr.f32.gmra.mrb[0].mxu0 %v155
      %v323 = vpop.f32.mrb[0].mxu0
      %v324 = vadd.f32 %v202, %v323
      %v325 = vpop.f32.mrb[0].mxu0
      %v326 = vadd.f32 %v206, %v325
      %327 = vmatprep.mubr.f32.mxu0 0.0
      %328 = vmatmul.mubr.f32.gmra.mrb[0].mxu0 %v156
      %v329 = vpop.f32.mrb[0].mxu0
      %v330 = vadd.f32 %v202, %v329
      %v331 = vpop.f32.mrb[0].mxu0
      %v332 = vadd.f32 %v206, %v331
      %333 = vmatprep.mubr.f32.mxu0 0.0
      %334 = vmatmul.mubr.f32.gmra.mrb[0].mxu0 %v157
      %v335 = vpop.f32.mrb[0].mxu0
      %v336 = vadd.f32 %v202, %v335
      %v337 = vpop.f32.mrb[0].mxu0
      %v338 = vadd.f32 %v206, %v337
      %339 = vmatprep.mubr.f32.mxu0 0.0
      %340 = vmatmul.mubr.f32.gmra.mrb[0].mxu0 %v158
      %v341 = vpop.f32.mrb[0].mxu0
      %v342 = vadd.f32 %v202, %v341
      %v343 = vpop.f32.mrb[0].mxu0
      %v344 = vadd.f32 %v206, %v343
      %345 = vmatprep.mubr.f32.mxu0 0.0
      %346 = vmatmul.mubr.f32.gmra.mrb[0].mxu0 %v159
      %v347 = vpop.f32.mrb[0].mxu0
      %v348 = vadd.f32 %v202, %v347
      %v349 = vpop.f32.mrb[0].mxu0
      %v350 = vadd.f32 %v206, %v349
      %351 = vmatprep.mubr.f32.mxu0 0.0
      %352 = vmatmul.mubr.f32.gmra.mrb[0].mxu0 %v160
      %v353 = vpop.f32.mrb[0].mxu0
      %v354 = vadd.f32 %v202, %v353
      %v355 = vpop.f32.mrb[0].mxu0
      %v356 = vadd.f32 %v206, %v355
      %357 = vmatprep.mubr.f32.mxu0 0.0
      %358 = vmatmul.mubr.f32.gmra.mrb[0].mxu0 %v161
      %v359 = vpop.f32.mrb[0].mxu0
      %v360 = vadd.f32 %v202, %v359
      %v361 = vpop.f32.mrb[0].mxu0
      %v362 = vadd.f32 %v206, %v361
      %363 = vmatprep.mubr.f32.mxu0 0.0
      %364 = vmatmul.mubr.f32.gmra.mrb[0].mxu0 %v162
      %v365 = vpop.f32.mrb[0].mxu0
      %v366 = vadd.f32 %v202, %v365
      %v367 = vpop.f32.mrb[0].mxu0
      %v368 = vadd.f32 %v206, %v367
      %369 = vdwg.mxu0
      %v370 = vmax.f32 %v276, 0.0
      %v371 = vmax.f32 %v282, 0.0
      %v372 = vmax.f32 %v288, 0.0
      %v373 = vmax.f32 %v294, 0.0
      %v374 = vmax.f32 %v300, 0.0
      %v375 = vmax.f32 %v306, 0.0
      %v376 = vmax.f32 %v312, 0.0
      %v377 = vmax.f32 %v318, 0.0
      %v378 = vmax.f32 %v324, 0.0
      %v379 = vmax.f32 %v330, 0.0
      %v380 = vmax.f32 %v336, 0.0
      %v381 = vmax.f32 %v342, 0.0
      %v382 = vmax.f32 %v348, 0.0
      %v383 = vmax.f32 %v354, 0.0
      %v384 = vmax.f32 %v360, 0.0
      %v385 = vmax.f32 %v366, 0.0
      %v386 = vmax.f32 %v278, 0.0
      %v387 = vmax.f32 %v284, 0.0
      %v388 = vmax.f32 %v290, 0.0
      %v389 = vmax.f32 %v296, 0.0
      %v390 = vmax.f32 %v302, 0.0
      %v391 = vmax.f32 %v308, 0.0
      %v392 = vmax.f32 %v314, 0.0
      %v393 = vmax.f32 %v320, 0.0
      %v394 = vmax.f32 %v326, 0.0
      %v395 = vmax.f32 %v332, 0.0
      %v396 = vmax.f32 %v338, 0.0
      %v397 = vmax.f32 %v344, 0.0
      %v398 = vmax.f32 %v350, 0.0
      %v399 = vmax.f32 %v356, 0.0
      %v400 = vmax.f32 %v362, 0.0
      %v401 = vmax.f32 %v368, 0.0
      %402 = vst [vmem:[#allocation2] sm:$0xff] %v386
      %403 = vst [vmem:[#allocation2 + $0x8] sm:$0xff] %v387
      %404 = vst [vmem:[#allocation2 + $0x10] sm:$0xff] %v388
      %405 = vst [vmem:[#allocation2 + $0x18] sm:$0xff] %v389
      %406 = vst [vmem:[#allocation2 + $0x20] sm:$0xff] %v390
      %407 = vst [vmem:[#allocation2 + $0x28] sm:$0xff] %v391
      %408 = vst [vmem:[#allocation2 + $0x30] sm:$0xff] %v392
      %409 = vst [vmem:[#allocation2 + $0x38] sm:$0xff] %v393
      %410 = vst [vmem:[#allocation2 + $0x40] sm:$0xff] %v394
      %411 = vst [vmem:[#allocation2 + $0x48] sm:$0xff] %v395
      %412 = vst [vmem:[#allocation2 + $0x50] sm:$0xff] %v396
      %413 = vst [vmem:[#allocation2 + $0x58] sm:$0xff] %v397
      %414 = vst [vmem:[#allocation2 + $0x60] sm:$0xff] %v398
      %415 = vst [vmem:[#allocation2 + $0x68] sm:$0xff] %v399
      %416 = vst [vmem:[#allocation2 + $0x70] sm:$0xff] %v400
      %417 = vst [vmem:[#allocation2 + $0x78] sm:$0xff] %v401
      %v418 = vadd.f32 %v278, %v197
      %v419 = vadd.f32 %v284, %v197
      %v420 = vadd.f32 %v290, %v197
      %v421 = vadd.f32 %v296, %v197
      %v422 = vadd.f32 %v302, %v197
      %v423 = vadd.f32 %v308, %v197
      %v424 = vadd.f32 %v314, %v197
      %v425 = vadd.f32 %v320, %v197
      %v426 = vadd.f32 %v326, %v197
      %v427 = vadd.f32 %v332, %v197
      %v428 = vadd.f32 %v338, %v197
      %v429 = vadd.f32 %v344, %v197
      %v430 = vadd.f32 %v350, %v197
      %v431 = vadd.f32 %v356, %v197
      %v432 = vadd.f32 %v362, %v197
      %v433 = vadd.f32 %v368, %v197
      %v434 = vmax.f32 %v418, 0.0
      %v435 = vmax.f32 %v419, 0.0
      %v436 = vmax.f32 %v420, 0.0
      %v437 = vmax.f32 %v421, 0.0
      %v438 = vmax.f32 %v422, 0.0
      %v439 = vmax.f32 %v423, 0.0
      %v440 = vmax.f32 %v424, 0.0
      %v441 = vmax.f32 %v425, 0.0
      %v442 = vmax.f32 %v426, 0.0
      %v443 = vmax.f32 %v427, 0.0
      %v444 = vmax.f32 %v428, 0.0
      %v445 = vmax.f32 %v429, 0.0
      %v446 = vmax.f32 %v430, 0.0
      %v447 = vmax.f32 %v431, 0.0
      %v448 = vmax.f32 %v432, 0.0
      %v449 = vmax.f32 %v433, 0.0
      %450 = vst [vmem:[#allocation2 + $0x80] sm:$0xff] %v434
      %451 = vst [vmem:[#allocation2 + $0x88] sm:$0xff] %v435
      %452 = vst [vmem:[#allocation2 + $0x90] sm:$0xff] %v436
      %453 = vst [vmem:[#allocation2 + $0x98] sm:$0xff] %v437
      %454 = vst [vmem:[#allocation2 + $0xa0] sm:$0xff] %v438
      %455 = vst [vmem:[#allocation2 + $0xa8] sm:$0xff] %v439
      %456 = vst [vmem:[#allocation2 + $0xb0] sm:$0xff] %v440
      %457 = vst [vmem:[#allocation2 + $0xb8] sm:$0xff] %v441
      %458 = vst [vmem:[#allocation2 + $0xc0] sm:$0xff] %v442
      %459 = vst [vmem:[#allocation2 + $0xc8] sm:$0xff] %v443
      %460 = vst [vmem:[#allocation2 + $0xd0] sm:$0xff] %v444
      %461 = vst [vmem:[#allocation2 + $0xd8] sm:$0xff] %v445
      %462 = vst [vmem:[#allocation2 + $0xe0] sm:$0xff] %v446
      %463 = vst [vmem:[#allocation2 + $0xe8] sm:$0xff] %v447
      %464 = vst [vmem:[#allocation2 + $0xf0] sm:$0xff] %v448
      %465 = vst [vmem:[#allocation2 + $0xf8] sm:$0xff] %v449
      %v466 = vld [vmem:[%s1 + $0x110] sm:$0xff]
      %v467 = vld [vmem:[%s1 + $0x120] sm:$0xff]
      %v468 = vld [vmem:[%s1 + $0x130] sm:$0xff]
      %v469 = vld [vmem:[%s1 + $0x140] sm:$0xff]
      %v470 = vld [vmem:[%s1 + $0x150] sm:$0xff]
      %v471 = vld [vmem:[%s1 + $0x160] sm:$0xff]
      %v472 = vld [vmem:[%s1 + $0x170] sm:$0xff]
      %v473 = vld [vmem:[%s1 + $0x180] sm:$0xff]
      %v474 = vld [vmem:[%s1 + $0x190] sm:$0xff]
      %v475 = vld [vmem:[%s1 + $0x1a0] sm:$0xff]
      %v476 = vld [vmem:[%s1 + $0x1b0] sm:$0xff]
      %v477 = vld [vmem:[%s1 + $0x1c0] sm:$0xff]
      %v478 = vld [vmem:[%s1 + $0x1d0] sm:$0xff]
      %v479 = vld [vmem:[%s1 + $0x1e0] sm:$0xff]
      %v480 = vld [vmem:[%s1 + $0x1f0] sm:$0xff]
      %v481 = vld [vmem:[%s1 + $0x200] sm:$0xff]
      %v482 = vld [vmem:[%s1 + $0x210] ss:$0 sm:$0xff]
      %483 = vmatprep.subr.mxu0 0.0
      %484 = vmatpush1.msra.mxu0 %v466
      %485 = vmatprep.subr.mxu0 0.0
      %486 = vmatpush1.msra.mxu0 %v467
      %487 = vmatprep.subr.mxu0 0.0
      %488 = vmatpush1.msra.mxu0 %v468
      %489 = vmatprep.subr.mxu0 0.0
      %490 = vmatpush1.msra.mxu0 %v469
      %491 = vmatprep.subr.mxu0 0.0
      %492 = vmatpush1.msra.mxu0 %v470
      %493 = vmatprep.subr.mxu0 0.0
      %494 = vmatpush1.msra.mxu0 %v471
      %495 = vmatprep.subr.mxu0 0.0
      %496 = vmatpush1.msra.mxu0 %v472
      %497 = vmatprep.subr.mxu0 0.0
      %498 = vmatpush1.msra.mxu0 %v473
      %499 = vmatprep.subr.mxu0 0.0
      %500 = vmatpush1.msra.mxu0 %v474
      %501 = vmatprep.subr.mxu0 0.0
      %502 = vmatpush1.msra.mxu0 %v475
      %503 = vmatprep.subr.mxu0 0.0
      %504 = vmatpush1.msra.mxu0 %v476
      %505 = vmatprep.subr.mxu0 0.0
      %506 = vmatpush1.msra.mxu0 %v477
      %507 = vmatprep.subr.mxu0 0.0
      %508 = vmatpush1.msra.mxu0 %v478
      %509 = vmatprep.subr.mxu0 0.0
      %510 = vmatpush1.msra.mxu0 %v479
      %511 = vmatprep.subr.mxu0 0.0
      %512 = vmatpush1.msra.mxu0 %v480
      %513 = vmatprep.subr.mxu0 0.0
      %514 = vmatpush1.msra.mxu0 %v481
      %515 = vmatprep.subr.mxu0 0.0
      %516 = vmatpush1.msra.mxu0 0.0
      %517 = vmatprep.subr.mxu0 0.0
      %518 = vmatpush1.msra.mxu0 0.0
      %519 = vmatprep.subr.mxu0 0.0
      %520 = vmatpush1.msra.mxu0 0.0
      %521 = vmatprep.subr.mxu0 0.0
      %522 = vmatpush1.msra.mxu0 0.0
      %523 = vmatprep.subr.mxu0 0.0
      %524 = vmatpush1.msra.mxu0 0.0
      %525 = vmatprep.subr.mxu0 0.0
      %526 = vmatpush1.msra.mxu0 0.0
      %527 = vmatprep.subr.mxu0 0.0
      %528 = vmatpush1.msra.mxu0 0.0
      %529 = vmatprep.subr.mxu0 0.0
      %530 = vmatpush1.msra.mxu0 0.0
      %531 = vmatprep.subr.mxu0 0.0
      %532 = vmatpush1.msra.mxu0 0.0
      %533 = vmatprep.subr.mxu0 0.0
      %534 = vmatpush1.msra.mxu0 0.0
      %535 = vmatprep.subr.mxu0 0.0
      %536 = vmatpush1.msra.mxu0 0.0
      %537 = vmatprep.subr.mxu0 0.0
      %538 = vmatpush1.msra.mxu0 0.0
      %539 = vmatprep.subr.mxu0 0.0
      %540 = vmatpush1.msra.mxu0 0.0
      %541 = vmatprep.subr.mxu0 0.0
      %542 = vmatpush1.msra.mxu0 0.0
      %543 = vmatprep.subr.mxu0 0.0
      %544 = vmatpush1.msra.mxu0 0.0
      %545 = vmatprep.subr.mxu0 0.0
      %546 = vmatpush1.msra.mxu0 0.0
      %547 = vmatprep.mubr.f32.mxu0 0.0
      %548 = vmatmul.mubr.f32.gmra.mrb[0].mxu0 %v370
      %v549 = vpop.f32.mrb[0].mxu0
      %v550 = vadd.f32 %v482, %v549
      %v551 = vpop.f32.mrb[0].mxu0
      %552 = vmatprep.mubr.f32.mxu0 0.0
      %553 = vmatmul.mubr.f32.gmra.mrb[0].mxu0 %v371
      %v554 = vpop.f32.mrb[0].mxu0
      %v555 = vadd.f32 %v482, %v554
      %v556 = vpop.f32.mrb[0].mxu0
      %557 = vmatprep.mubr.f32.mxu0 0.0
      %558 = vmatmul.mubr.f32.gmra.mrb[0].mxu0 %v372
      %v559 = vpop.f32.mrb[0].mxu0
      %v560 = vadd.f32 %v482, %v559
      %v561 = vpop.f32.mrb[0].mxu0
      %562 = vmatprep.mubr.f32.mxu0 0.0
      %563 = vmatmul.mubr.f32.gmra.mrb[0].mxu0 %v373
      %v564 = vpop.f32.mrb[0].mxu0
      %v565 = vadd.f32 %v482, %v564
      %v566 = vpop.f32.mrb[0].mxu0
      %567 = vmatprep.mubr.f32.mxu0 0.0
      %568 = vmatmul.mubr.f32.gmra.mrb[0].mxu0 %v374
      %v569 = vpop.f32.mrb[0].mxu0
      %v570 = vadd.f32 %v482, %v569
      %v571 = vpop.f32.mrb[0].mxu0
      %572 = vmatprep.mubr.f32.mxu0 0.0
      %573 = vmatmul.mubr.f32.gmra.mrb[0].mxu0 %v375
      %v574 = vpop.f32.mrb[0].mxu0
      %v575 = vadd.f32 %v482, %v574
      %v576 = vpop.f32.mrb[0].mxu0
      %577 = vmatprep.mubr.f32.mxu0 0.0
      %578 = vmatmul.mubr.f32.gmra.mrb[0].mxu0 %v376
      %v579 = vpop.f32.mrb[0].mxu0
      %v580 = vadd.f32 %v482, %v579
      %v581 = vpop.f32.mrb[0].mxu0
      %582 = vmatprep.mubr.f32.mxu0 0.0
      %583 = vmatmul.mubr.f32.gmra.mrb[0].mxu0 %v377
      %v584 = vpop.f32.mrb[0].mxu0
      %v585 = vadd.f32 %v482, %v584
      %v586 = vpop.f32.mrb[0].mxu0
      %587 = vmatprep.mubr.f32.mxu0 0.0
      %588 = vmatmul.mubr.f32.gmra.mrb[0].mxu0 %v378
      %v589 = vpop.f32.mrb[0].mxu0
      %v590 = vadd.f32 %v482, %v589
      %v591 = vpop.f32.mrb[0].mxu0
      %592 = vmatprep.mubr.f32.mxu0 0.0
      %593 = vmatmul.mubr.f32.gmra.mrb[0].mxu0 %v379
      %v594 = vpop.f32.mrb[0].mxu0
      %v595 = vadd.f32 %v482, %v594
      %v596 = vpop.f32.mrb[0].mxu0
      %597 = vmatprep.mubr.f32.mxu0 0.0
      %598 = vmatmul.mubr.f32.gmra.mrb[0].mxu0 %v380
      %v599 = vpop.f32.mrb[0].mxu0
      %v600 = vadd.f32 %v482, %v599
      %v601 = vpop.f32.mrb[0].mxu0
      %602 = vmatprep.mubr.f32.mxu0 0.0
      %603 = vmatmul.mubr.f32.gmra.mrb[0].mxu0 %v381
      %v604 = vpop.f32.mrb[0].mxu0
      %v605 = vadd.f32 %v482, %v604
      %v606 = vpop.f32.mrb[0].mxu0
      %607 = vmatprep.mubr.f32.mxu0 0.0
      %608 = vmatmul.mubr.f32.gmra.mrb[0].mxu0 %v382
      %v609 = vpop.f32.mrb[0].mxu0
      %v610 = vadd.f32 %v482, %v609
      %v611 = vpop.f32.mrb[0].mxu0
      %612 = vmatprep.mubr.f32.mxu0 0.0
      %613 = vmatmul.mubr.f32.gmra.mrb[0].mxu0 %v383
      %v614 = vpop.f32.mrb[0].mxu0
      %v615 = vadd.f32 %v482, %v614
      %v616 = vpop.f32.mrb[0].mxu0
      %617 = vmatprep.mubr.f32.mxu0 0.0
      %618 = vmatmul.mubr.f32.gmra.mrb[0].mxu0 %v384
      %v619 = vpop.f32.mrb[0].mxu0
      %v620 = vadd.f32 %v482, %v619
      %v621 = vpop.f32.mrb[0].mxu0
      %622 = vmatprep.mubr.f32.mxu0 0.0
      %623 = vmatmul.mubr.f32.gmra.mrb[0].mxu0 %v385
      %v624 = vpop.f32.mrb[0].mxu0
      %v625 = vadd.f32 %v482, %v624
      %v626 = vpop.f32.mrb[0].mxu0
      %627 = vdwg.mxu0
      %v628 = vmax.f32 %v550, 0.0
      %v629 = vmax.f32 %v555, 0.0
      %v630 = vmax.f32 %v560, 0.0
      %v631 = vmax.f32 %v565, 0.0
      %v632 = vmax.f32 %v570, 0.0
      %v633 = vmax.f32 %v575, 0.0
      %v634 = vmax.f32 %v580, 0.0
      %v635 = vmax.f32 %v585, 0.0
      %v636 = vmax.f32 %v590, 0.0
      %v637 = vmax.f32 %v595, 0.0
      %v638 = vmax.f32 %v600, 0.0
      %v639 = vmax.f32 %v605, 0.0
      %v640 = vmax.f32 %v610, 0.0
      %v641 = vmax.f32 %v615, 0.0
      %v642 = vmax.f32 %v620, 0.0
      %v643 = vmax.f32 %v625, 0.0
      %v644 = vld [vmem:[%s1 + $0x220] sm:$0xff]
      %v645 = vld [vmem:[%s1 + $0x230] sm:$0xff]
      %v646 = vld [vmem:[%s1 + $0x240] sm:$0xff]
      %v647 = vld [vmem:[%s1 + $0x250] sm:$0xff]
      %v648 = vld [vmem:[%s1 + $0x260] sm:$0xff]
      %v649 = vld [vmem:[%s1 + $0x270] sm:$0xff]
      %v650 = vld [vmem:[%s1 + $0x280] sm:$0xff]
      %v651 = vld [vmem:[%s1 + $0x290] sm:$0xff]
      %v652 = vld [vmem:[%s1 + $0x2a0] sm:$0xff]
      %v653 = vld [vmem:[%s1 + $0x2b0] sm:$0xff]
      %v654 = vld [vmem:[%s1 + $0x2c0] sm:$0xff]
      %v655 = vld [vmem:[%s1 + $0x2d0] sm:$0xff]
      %v656 = vld [vmem:[%s1 + $0x2e0] sm:$0xff]
      %v657 = vld [vmem:[%s1 + $0x2f0] sm:$0xff]
      %v658 = vld [vmem:[%s1 + $0x300] sm:$0xff]
      %v659 = vld [vmem:[%s1 + $0x310] sm:$0xff]
      %v660 = vld [vmem:[%s1 + $0x320] ss:$0 sm:$0xff]
      %661 = vmatprep.subr.mxu0 0.0
      %662 = vmatpush1.msra.mxu0 %v644
      %663 = vmatprep.subr.mxu0 0.0
      %664 = vmatpush1.msra.mxu0 %v645
      %665 = vmatprep.subr.mxu0 0.0
      %666 = vmatpush1.msra.mxu0 %v646
      %667 = vmatprep.subr.mxu0 0.0
      %668 = vmatpush1.msra.mxu0 %v647
      %669 = vmatprep.subr.mxu0 0.0
      %670 = vmatpush1.msra.mxu0 %v648
      %671 = vmatprep.subr.mxu0 0.0
      %672 = vmatpush1.msra.mxu0 %v649
      %673 = vmatprep.subr.mxu0 0.0
      %674 = vmatpush1.msra.mxu0 %v650
      %675 = vmatprep.subr.mxu0 0.0
      %676 = vmatpush1.msra.mxu0 %v651
      %677 = vmatprep.subr.mxu0 0.0
      %678 = vmatpush1.msra.mxu0 %v652
      %679 = vmatprep.subr.mxu0 0.0
      %680 = vmatpush1.msra.mxu0 %v653
      %681 = vmatprep.subr.mxu0 0.0
      %682 = vmatpush1.msra.mxu0 %v654
      %683 = vmatprep.subr.mxu0 0.0
      %684 = vmatpush1.msra.mxu0 %v655
      %685 = vmatprep.subr.mxu0 0.0
      %686 = vmatpush1.msra.mxu0 %v656
      %687 = vmatprep.subr.mxu0 0.0
      %688 = vmatpush1.msra.mxu0 %v657
      %689 = vmatprep.subr.mxu0 0.0
      %690 = vmatpush1.msra.mxu0 %v658
      %691 = vmatprep.subr.mxu0 0.0
      %692 = vmatpush1.msra.mxu0 %v659
      %693 = vmatprep.subr.mxu0 0.0
      %694 = vmatpush1.msra.mxu0 0.0
      %695 = vmatprep.subr.mxu0 0.0
      %696 = vmatpush1.msra.mxu0 0.0
      %697 = vmatprep.subr.mxu0 0.0
      %698 = vmatpush1.msra.mxu0 0.0
      %699 = vmatprep.subr.mxu0 0.0
      %700 = vmatpush1.msra.mxu0 0.0
      %701 = vmatprep.subr.mxu0 0.0
      %702 = vmatpush1.msra.mxu0 0.0
      %703 = vmatprep.subr.mxu0 0.0
      %704 = vmatpush1.msra.mxu0 0.0
      %705 = vmatprep.subr.mxu0 0.0
      %706 = vmatpush1.msra.mxu0 0.0
      %707 = vmatprep.subr.mxu0 0.0
      %708 = vmatpush1.msra.mxu0 0.0
      %709 = vmatprep.subr.mxu0 0.0
      %710 = vmatpush1.msra.mxu0 0.0
      %711 = vmatprep.subr.mxu0 0.0
      %712 = vmatpush1.msra.mxu0 0.0
      %713 = vmatprep.subr.mxu0 0.0
      %714 = vmatpush1.msra.mxu0 0.0
      %715 = vmatprep.subr.mxu0 0.0
      %716 = vmatpush1.msra.mxu0 0.0
      %717 = vmatprep.subr.mxu0 0.0
      %718 = vmatpush1.msra.mxu0 0.0
      %719 = vmatprep.subr.mxu0 0.0
      %720 = vmatpush1.msra.mxu0 0.0
      %721 = vmatprep.subr.mxu0 0.0
      %722 = vmatpush1.msra.mxu0 0.0
      %723 = vmatprep.subr.mxu0 0.0
      %724 = vmatpush1.msra.mxu0 0.0
      %725 = vmatprep.mubr.f32.mxu0 0.0
      %726 = vmatmul.mubr.f32.gmra.mrb[0].mxu0 %v628
      %v727 = vpop.f32.mrb[0].mxu0
      %v728 = vadd.f32 %v660, %v727
      %v729 = vpop.f32.mrb[0].mxu0
      %730 = vmatprep.mubr.f32.mxu0 0.0
      %731 = vmatmul.mubr.f32.gmra.mrb[0].mxu0 %v629
      %v732 = vpop.f32.mrb[0].mxu0
      %v733 = vadd.f32 %v660, %v732
      %v734 = vpop.f32.mrb[0].mxu0
      %735 = vmatprep.mubr.f32.mxu0 0.0
      %736 = vmatmul.mubr.f32.gmra.mrb[0].mxu0 %v630
      %v737 = vpop.f32.mrb[0].mxu0
      %v738 = vadd.f32 %v660, %v737
      %v739 = vpop.f32.mrb[0].mxu0
      %740 = vmatprep.mubr.f32.mxu0 0.0
      %741 = vmatmul.mubr.f32.gmra.mrb[0].mxu0 %v631
      %v742 = vpop.f32.mrb[0].mxu0
      %v743 = vadd.f32 %v660, %v742
      %v744 = vpop.f32.mrb[0].mxu0
      %745 = vmatprep.mubr.f32.mxu0 0.0
      %746 = vmatmul.mubr.f32.gmra.mrb[0].mxu0 %v632
      %v747 = vpop.f32.mrb[0].mxu0
      %v748 = vadd.f32 %v660, %v747
      %v749 = vpop.f32.mrb[0].mxu0
      %750 = vmatprep.mubr.f32.mxu0 0.0
      %751 = vmatmul.mubr.f32.gmra.mrb[0].mxu0 %v633
      %v752 = vpop.f32.mrb[0].mxu0
      %v753 = vadd.f32 %v660, %v752
      %v754 = vpop.f32.mrb[0].mxu0
      %755 = vmatprep.mubr.f32.mxu0 0.0
      %756 = vmatmul.mubr.f32.gmra.mrb[0].mxu0 %v634
      %v757 = vpop.f32.mrb[0].mxu0
      %v758 = vadd.f32 %v660, %v757
      %v759 = vpop.f32.mrb[0].mxu0
      %760 = vmatprep.mubr.f32.mxu0 0.0
      %761 = vmatmul.mubr.f32.gmra.mrb[0].mxu0 %v635
      %v762 = vpop.f32.mrb[0].mxu0
      %v763 = vadd.f32 %v660, %v762
      %v764 = vpop.f32.mrb[0].mxu0
      %765 = vmatprep.mubr.f32.mxu0 0.0
      %766 = vmatmul.mubr.f32.gmra.mrb[0].mxu0 %v636
      %v767 = vpop.f32.mrb[0].mxu0
      %v768 = vadd.f32 %v660, %v767
      %v769 = vpop.f32.mrb[0].mxu0
      %770 = vmatprep.mubr.f32.mxu0 0.0
      %771 = vmatmul.mubr.f32.gmra.mrb[0].mxu0 %v637
      %v772 = vpop.f32.mrb[0].mxu0
      %v773 = vadd.f32 %v660, %v772
      %v774 = vpop.f32.mrb[0].mxu0
      %775 = vmatprep.mubr.f32.mxu0 0.0
      %776 = vmatmul.mubr.f32.gmra.mrb[0].mxu0 %v638
      %v777 = vpop.f32.mrb[0].mxu0
      %v778 = vadd.f32 %v660, %v777
      %v779 = vpop.f32.mrb[0].mxu0
      %780 = vmatprep.mubr.f32.mxu0 0.0
      %781 = vmatmul.mubr.f32.gmra.mrb[0].mxu0 %v639
      %v782 = vpop.f32.mrb[0].mxu0
      %v783 = vadd.f32 %v660, %v782
      %v784 = vpop.f32.mrb[0].mxu0
      %785 = vmatprep.mubr.f32.mxu0 0.0
      %786 = vmatmul.mubr.f32.gmra.mrb[0].mxu0 %v640
      %v787 = vpop.f32.mrb[0].mxu0
      %v788 = vadd.f32 %v660, %v787
      %v789 = vpop.f32.mrb[0].mxu0
      %790 = vmatprep.mubr.f32.mxu0 0.0
      %791 = vmatmul.mubr.f32.gmra.mrb[0].mxu0 %v641
      %v792 = vpop.f32.mrb[0].mxu0
      %v793 = vadd.f32 %v660, %v792
      %v794 = vpop.f32.mrb[0].mxu0
      %795 = vmatprep.mubr.f32.mxu0 0.0
      %796 = vmatmul.mubr.f32.gmra.mrb[0].mxu0 %v642
      %v797 = vpop.f32.mrb[0].mxu0
      %v798 = vadd.f32 %v660, %v797
      %v799 = vpop.f32.mrb[0].mxu0
      %800 = vmatprep.mubr.f32.mxu0 0.0
      %801 = vmatmul.mubr.f32.gmra.mrb[0].mxu0 %v643
      %v802 = vpop.f32.mrb[0].mxu0
      %v803 = vadd.f32 %v660, %v802
      %v804 = vpop.f32.mrb[0].mxu0
      %805 = vdwg.mxu0
      %v806 = vmax.f32 %v728, 0.0
      %v807 = vmax.f32 %v733, 0.0
      %v808 = vmax.f32 %v738, 0.0
      %v809 = vmax.f32 %v743, 0.0
      %v810 = vmax.f32 %v748, 0.0
      %v811 = vmax.f32 %v753, 0.0
      %v812 = vmax.f32 %v758, 0.0
      %v813 = vmax.f32 %v763, 0.0
      %v814 = vmax.f32 %v768, 0.0
      %v815 = vmax.f32 %v773, 0.0
      %v816 = vmax.f32 %v778, 0.0
      %v817 = vmax.f32 %v783, 0.0
      %v818 = vmax.f32 %v788, 0.0
      %v819 = vmax.f32 %v793, 0.0
      %v820 = vmax.f32 %v798, 0.0
      %v821 = vmax.f32 %v803, 0.0
      %v822 = vld [vmem:[%s1 + $0x330] sm:$0xff]
      %v823 = vld [vmem:[%s1 + $0x340] sm:$0xff]
      %v824 = vld [vmem:[%s1 + $0x350] sm:$0xff]
      %v825 = vld [vmem:[%s1 + $0x360] sm:$0xff]
      %v826 = vld [vmem:[%s1 + $0x370] sm:$0xff]
      %v827 = vld [vmem:[%s1 + $0x380] sm:$0xff]
      %v828 = vld [vmem:[%s1 + $0x390] sm:$0xff]
      %v829 = vld [vmem:[%s1 + $0x3a0] sm:$0xff]
      %v830 = vld [vmem:[%s1 + $0x3b0] sm:$0xff]
      %v831 = vld [vmem:[%s1 + $0x3c0] sm:$0xff]
      %v832 = vld [vmem:[%s1 + $0x3d0] sm:$0xff]
      %v833 = vld [vmem:[%s1 + $0x3e0] sm:$0xff]
      %v834 = vld [vmem:[%s1 + $0x3f0] sm:$0xff]
      %v835 = vld [vmem:[%s1 + $0x400] sm:$0xff]
      %v836 = vld [vmem:[%s1 + $0x410] sm:$0xff]
      %v837 = vld [vmem:[%s1 + $0x420] sm:$0xff]
      %v838 = vld [vmem:[%s1 + $0x430] ss:$0 sm:$0xff]
      %839 = vmatprep.subr.mxu0 0.0
      %840 = vmatpush1.msra.mxu0 %v822
      %841 = vmatprep.subr.mxu0 0.0
      %842 = vmatpush1.msra.mxu0 %v823
      %843 = vmatprep.subr.mxu0 0.0
      %844 = vmatpush1.msra.mxu0 %v824
      %845 = vmatprep.subr.mxu0 0.0
      %846 = vmatpush1.msra.mxu0 %v825
      %847 = vmatprep.subr.mxu0 0.0
      %848 = vmatpush1.msra.mxu0 %v826
      %849 = vmatprep.subr.mxu0 0.0
      %850 = vmatpush1.msra.mxu0 %v827
      %851 = vmatprep.subr.mxu0 0.0
      %852 = vmatpush1.msra.mxu0 %v828
      %853 = vmatprep.subr.mxu0 0.0
      %854 = vmatpush1.msra.mxu0 %v829
      %855 = vmatprep.subr.mxu0 0.0
      %856 = vmatpush1.msra.mxu0 %v830
      %857 = vmatprep.subr.mxu0 0.0
      %858 = vmatpush1.msra.mxu0 %v831
      %859 = vmatprep.subr.mxu0 0.0
      %860 = vmatpush1.msra.mxu0 %v832
      %861 = vmatprep.subr.mxu0 0.0
      %862 = vmatpush1.msra.mxu0 %v833
      %863 = vmatprep.subr.mxu0 0.0
      %864 = vmatpush1.msra.mxu0 %v834
      %865 = vmatprep.subr.mxu0 0.0
      %866 = vmatpush1.msra.mxu0 %v835
      %867 = vmatprep.subr.mxu0 0.0
      %868 = vmatpush1.msra.mxu0 %v836
      %869 = vmatprep.subr.mxu0 0.0
      %870 = vmatpush1.msra.mxu0 %v837
      %871 = vmatprep.subr.mxu0 0.0
      %872 = vmatpush1.msra.mxu0 0.0
      %873 = vmatprep.subr.mxu0 0.0
      %874 = vmatpush1.msra.mxu0 0.0
      %875 = vmatprep.subr.mxu0 0.0
      %876 = vmatpush1.msra.mxu0 0.0
      %877 = vmatprep.subr.mxu0 0.0
      %878 = vmatpush1.msra.mxu0 0.0
      %879 = vmatprep.subr.mxu0 0.0
      %880 = vmatpush1.msra.mxu0 0.0
      %881 = vmatprep.subr.mxu0 0.0
      %882 = vmatpush1.msra.mxu0 0.0
      %883 = vmatprep.subr.mxu0 0.0
      %884 = vmatpush1.msra.mxu0 0.0
      %885 = vmatprep.subr.mxu0 0.0
      %886 = vmatpush1.msra.mxu0 0.0
      %887 = vmatprep.subr.mxu0 0.0
      %888 = vmatpush1.msra.mxu0 0.0
      %889 = vmatprep.subr.mxu0 0.0
      %890 = vmatpush1.msra.mxu0 0.0
      %891 = vmatprep.subr.mxu0 0.0
      %892 = vmatpush1.msra.mxu0 0.0
      %893 = vmatprep.subr.mxu0 0.0
      %894 = vmatpush1.msra.mxu0 0.0
      %895 = vmatprep.subr.mxu0 0.0
      %896 = vmatpush1.msra.mxu0 0.0
      %897 = vmatprep.subr.mxu0 0.0
      %898 = vmatpush1.msra.mxu0 0.0
      %899 = vmatprep.subr.mxu0 0.0
      %900 = vmatpush1.msra.mxu0 0.0
      %901 = vmatprep.subr.mxu0 0.0
      %902 = vmatpush1.msra.mxu0 0.0
      %903 = vmatprep.mubr.f32.mxu0 0.0
      %904 = vmatmul.mubr.f32.gmra.mrb[0].mxu0 %v806
      %v905 = vpop.f32.mrb[0].mxu0
      %v906 = vadd.f32 %v838, %v905
      %v907 = vpop.f32.mrb[0].mxu0
      %908 = vmatprep.mubr.f32.mxu0 0.0
      %909 = vmatmul.mubr.f32.gmra.mrb[0].mxu0 %v807
      %v910 = vpop.f32.mrb[0].mxu0
      %v911 = vadd.f32 %v838, %v910
      %v912 = vpop.f32.mrb[0].mxu0
      %913 = vmatprep.mubr.f32.mxu0 0.0
      %914 = vmatmul.mubr.f32.gmra.mrb[0].mxu0 %v808
      %v915 = vpop.f32.mrb[0].mxu0
      %v916 = vadd.f32 %v838, %v915
      %v917 = vpop.f32.mrb[0].mxu0
      %918 = vmatprep.mubr.f32.mxu0 0.0
      %919 = vmatmul.mubr.f32.gmra.mrb[0].mxu0 %v809
      %v920 = vpop.f32.mrb[0].mxu0
      %v921 = vadd.f32 %v838, %v920
      %v922 = vpop.f32.mrb[0].mxu0
      %923 = vmatprep.mubr.f32.mxu0 0.0
      %924 = vmatmul.mubr.f32.gmra.mrb[0].mxu0 %v810
      %v925 = vpop.f32.mrb[0].mxu0
      %v926 = vadd.f32 %v838, %v925
      %v927 = vpop.f32.mrb[0].mxu0
      %928 = vmatprep.mubr.f32.mxu0 0.0
      %929 = vmatmul.mubr.f32.gmra.mrb[0].mxu0 %v811
      %v930 = vpop.f32.mrb[0].mxu0
      %v931 = vadd.f32 %v838, %v930
      %v932 = vpop.f32.mrb[0].mxu0
      %933 = vmatprep.mubr.f32.mxu0 0.0
      %934 = vmatmul.mubr.f32.gmra.mrb[0].mxu0 %v812
      %v935 = vpop.f32.mrb[0].mxu0
      %v936 = vadd.f32 %v838, %v935
      %v937 = vpop.f32.mrb[0].mxu0
      %938 = vmatprep.mubr.f32.mxu0 0.0
      %939 = vmatmul.mubr.f32.gmra.mrb[0].mxu0 %v813
      %v940 = vpop.f32.mrb[0].mxu0
      %v941 = vadd.f32 %v838, %v940
      %v942 = vpop.f32.mrb[0].mxu0
      %943 = vmatprep.mubr.f32.mxu0 0.0
      %944 = vmatmul.mubr.f32.gmra.mrb[0].mxu0 %v814
      %v945 = vpop.f32.mrb[0].mxu0
      %v946 = vadd.f32 %v838, %v945
      %v947 = vpop.f32.mrb[0].mxu0
      %948 = vmatprep.mubr.f32.mxu0 0.0
      %949 = vmatmul.mubr.f32.gmra.mrb[0].mxu0 %v815
      %v950 = vpop.f32.mrb[0].mxu0
      %v951 = vadd.f32 %v838, %v950
      %v952 = vpop.f32.mrb[0].mxu0
      %953 = vmatprep.mubr.f32.mxu0 0.0
      %954 = vmatmul.mubr.f32.gmra.mrb[0].mxu0 %v816
      %v955 = vpop.f32.mrb[0].mxu0
      %v956 = vadd.f32 %v838, %v955
      %v957 = vpop.f32.mrb[0].mxu0
      %958 = vmatprep.mubr.f32.mxu0 0.0
      %959 = vmatmul.mubr.f32.gmra.mrb[0].mxu0 %v817
      %v960 = vpop.f32.mrb[0].mxu0
      %v961 = vadd.f32 %v838, %v960
      %v962 = vpop.f32.mrb[0].mxu0
      %963 = vmatprep.mubr.f32.mxu0 0.0
      %964 = vmatmul.mubr.f32.gmra.mrb[0].mxu0 %v818
      %v965 = vpop.f32.mrb[0].mxu0
      %v966 = vadd.f32 %v838, %v965
      %v967 = vpop.f32.mrb[0].mxu0
      %968 = vmatprep.mubr.f32.mxu0 0.0
      %969 = vmatmul.mubr.f32.gmra.mrb[0].mxu0 %v819
      %v970 = vpop.f32.mrb[0].mxu0
      %v971 = vadd.f32 %v838, %v970
      %v972 = vpop.f32.mrb[0].mxu0
      %973 = vmatprep.mubr.f32.mxu0 0.0
      %974 = vmatmul.mubr.f32.gmra.mrb[0].mxu0 %v820
      %v975 = vpop.f32.mrb[0].mxu0
      %v976 = vadd.f32 %v838, %v975
      %v977 = vpop.f32.mrb[0].mxu0
      %978 = vmatprep.mubr.f32.mxu0 0.0
      %979 = vmatmul.mubr.f32.gmra.mrb[0].mxu0 %v821
      %v980 = vpop.f32.mrb[0].mxu0
      %v981 = vadd.f32 %v838, %v980
      %v982 = vpop.f32.mrb[0].mxu0
      %983 = vdwg.mxu0
      %v984 = vld [vmem:[#allocation2] sm:$0xff]
      %v985 = vld [vmem:[#allocation2 + $0x8] sm:$0xff]
      %v986 = vld [vmem:[#allocation2 + $0x10] sm:$0xff]
      %v987 = vld [vmem:[#allocation2 + $0x18] sm:$0xff]
      %v988 = vld [vmem:[#allocation2 + $0x20] sm:$0xff]
      %v989 = vld [vmem:[#allocation2 + $0x28] sm:$0xff]
      %v990 = vld [vmem:[#allocation2 + $0x30] sm:$0xff]
      %v991 = vld [vmem:[#allocation2 + $0x38] sm:$0xff]
      %v992 = vld [vmem:[#allocation2 + $0x40] sm:$0xff]
      %v993 = vld [vmem:[#allocation2 + $0x48] sm:$0xff]
      %v994 = vld [vmem:[#allocation2 + $0x50] sm:$0xff]
      %v995 = vld [vmem:[#allocation2 + $0x58] sm:$0xff]
      %v996 = vld [vmem:[#allocation2 + $0x60] sm:$0xff]
      %v997 = vld [vmem:[#allocation2 + $0x68] sm:$0xff]
      %v998 = vld [vmem:[#allocation2 + $0x70] sm:$0xff]
      %v999 = vld [vmem:[#allocation2 + $0x78] sm:$0xff]
      %v1000 = vld [vmem:[#allocation2 + $0x80] sm:$0xff]
      %v1001 = vld [vmem:[#allocation2 + $0x88] sm:$0xff]
      %v1002 = vld [vmem:[#allocation2 + $0x90] sm:$0xff]
      %v1003 = vld [vmem:[#allocation2 + $0x98] sm:$0xff]
      %v1004 = vld [vmem:[#allocation2 + $0xa0] sm:$0xff]
      %v1005 = vld [vmem:[#allocation2 + $0xa8] sm:$0xff]
      %v1006 = vld [vmem:[#allocation2 + $0xb0] sm:$0xff]
      %v1007 = vld [vmem:[#allocation2 + $0xb8] sm:$0xff]
      %v1008 = vld [vmem:[#allocation2 + $0xc0] sm:$0xff]
      %v1009 = vld [vmem:[#allocation2 + $0xc8] sm:$0xff]
      %v1010 = vld [vmem:[#allocation2 + $0xd0] sm:$0xff]
      %v1011 = vld [vmem:[#allocation2 + $0xd8] sm:$0xff]
      %v1012 = vld [vmem:[#allocation2 + $0xe0] sm:$0xff]
      %v1013 = vld [vmem:[#allocation2 + $0xe8] sm:$0xff]
      %v1014 = vld [vmem:[#allocation2 + $0xf0] sm:$0xff]
      %v1015 = vld [vmem:[#allocation2 + $0xf8] sm:$0xff]
      %v1016 = vld [vmem:[%s1 + $0x118] sm:$0xff]
      %v1017 = vld [vmem:[%s1 + $0x128] sm:$0xff]
      %v1018 = vld [vmem:[%s1 + $0x138] sm:$0xff]
      %v1019 = vld [vmem:[%s1 + $0x148] sm:$0xff]
      %v1020 = vld [vmem:[%s1 + $0x158] sm:$0xff]
      %v1021 = vld [vmem:[%s1 + $0x168] sm:$0xff]
      %v1022 = vld [vmem:[%s1 + $0x178] sm:$0xff]
      %v1023 = vld [vmem:[%s1 + $0x188] sm:$0xff]
      %v1024 = vld [vmem:[%s1 + $0x198] sm:$0xff]
      %v1025 = vld [vmem:[%s1 + $0x1a8] sm:$0xff]
      %v1026 = vld [vmem:[%s1 + $0x1b8] sm:$0xff]
      %v1027 = vld [vmem:[%s1 + $0x1c8] sm:$0xff]
      %v1028 = vld [vmem:[%s1 + $0x1d8] sm:$0xff]
      %v1029 = vld [vmem:[%s1 + $0x1e8] sm:$0xff]
      %v1030 = vld [vmem:[%s1 + $0x1f8] sm:$0xff]
      %v1031 = vld [vmem:[%s1 + $0x208] sm:$0xff]
      %v1032 = vld [vmem:[%s1 + $0x218] ss:$0 sm:$0xff]
      %1033 = vmatprep.subr.mxu0 0.0
      %1034 = vmatpush1.msra.mxu0 %v1016
      %1035 = vmatprep.subr.mxu0 0.0
      %1036 = vmatpush1.msra.mxu0 %v1017
      %1037 = vmatprep.subr.mxu0 0.0
      %1038 = vmatpush1.msra.mxu0 %v1018
      %1039 = vmatprep.subr.mxu0 0.0
      %1040 = vmatpush1.msra.mxu0 %v1019
      %1041 = vmatprep.subr.mxu0 0.0
      %1042 = vmatpush1.msra.mxu0 %v1020
      %1043 = vmatprep.subr.mxu0 0.0
      %1044 = vmatpush1.msra.mxu0 %v1021
      %1045 = vmatprep.subr.mxu0 0.0
      %1046 = vmatpush1.msra.mxu0 %v1022
      %1047 = vmatprep.subr.mxu0 0.0
      %1048 = vmatpush1.msra.mxu0 %v1023
      %1049 = vmatprep.subr.mxu0 0.0
      %1050 = vmatpush1.msra.mxu0 %v1024
      %1051 = vmatprep.subr.mxu0 0.0
      %1052 = vmatpush1.msra.mxu0 %v1025
      %1053 = vmatprep.subr.mxu0 0.0
      %1054 = vmatpush1.msra.mxu0 %v1026
      %1055 = vmatprep.subr.mxu0 0.0
      %1056 = vmatpush1.msra.mxu0 %v1027
      %1057 = vmatprep.subr.mxu0 0.0
      %1058 = vmatpush1.msra.mxu0 %v1028
      %1059 = vmatprep.subr.mxu0 0.0
      %1060 = vmatpush1.msra.mxu0 %v1029
      %1061 = vmatprep.subr.mxu0 0.0
      %1062 = vmatpush1.msra.mxu0 %v1030
      %1063 = vmatprep.subr.mxu0 0.0
      %1064 = vmatpush1.msra.mxu0 %v1031
      %1065 = vmatprep.subr.mxu0 0.0
      %1066 = vmatpush1.msra.mxu0 0.0
      %1067 = vmatprep.subr.mxu0 0.0
      %1068 = vmatpush1.msra.mxu0 0.0
      %1069 = vmatprep.subr.mxu0 0.0
      %1070 = vmatpush1.msra.mxu0 0.0
      %1071 = vmatprep.subr.mxu0 0.0
      %1072 = vmatpush1.msra.mxu0 0.0
      %1073 = vmatprep.subr.mxu0 0.0
      %1074 = vmatpush1.msra.mxu0 0.0
      %1075 = vmatprep.subr.mxu0 0.0
      %1076 = vmatpush1.msra.mxu0 0.0
      %1077 = vmatprep.subr.mxu0 0.0
      %1078 = vmatpush1.msra.mxu0 0.0
      %1079 = vmatprep.subr.mxu0 0.0
      %1080 = vmatpush1.msra.mxu0 0.0
      %1081 = vmatprep.subr.mxu0 0.0
      %1082 = vmatpush1.msra.mxu0 0.0
      %1083 = vmatprep.subr.mxu0 0.0
      %1084 = vmatpush1.msra.mxu0 0.0
      %1085 = vmatprep.subr.mxu0 0.0
      %1086 = vmatpush1.msra.mxu0 0.0
      %1087 = vmatprep.subr.mxu0 0.0
      %1088 = vmatpush1.msra.mxu0 0.0
      %1089 = vmatprep.subr.mxu0 0.0
      %1090 = vmatpush1.msra.mxu0 0.0
      %1091 = vmatprep.subr.mxu0 0.0
      %1092 = vmatpush1.msra.mxu0 0.0
      %1093 = vmatprep.subr.mxu0 0.0
      %1094 = vmatpush1.msra.mxu0 0.0
      %1095 = vmatprep.subr.mxu0 0.0
      %1096 = vmatpush1.msra.mxu0 0.0
      %1097 = vmatprep.mubr.f32.mxu0 0.0
      %1098 = vmatmul.mubr.f32.gmra.mrb[0].mxu0 %v984
      %v1099 = vpop.f32.mrb[0].mxu0
      %v1100 = vadd.f32 %v1032, %v1099
      %v1101 = vpop.f32.mrb[0].mxu0
      %1102 = vmatprep.mubr.f32.mxu0 0.0
      %1103 = vmatmul.mubr.f32.gmra.mrb[0].mxu0 %v985
      %v1104 = vpop.f32.mrb[0].mxu0
      %v1105 = vadd.f32 %v1032, %v1104
      %v1106 = vpop.f32.mrb[0].mxu0
      %1107 = vmatprep.mubr.f32.mxu0 0.0
      %1108 = vmatmul.mubr.f32.gmra.mrb[0].mxu0 %v986
      %v1109 = vpop.f32.mrb[0].mxu0
      %v1110 = vadd.f32 %v1032, %v1109
      %v1111 = vpop.f32.mrb[0].mxu0
      %1112 = vmatprep.mubr.f32.mxu0 0.0
      %1113 = vmatmul.mubr.f32.gmra.mrb[0].mxu0 %v987
      %v1114 = vpop.f32.mrb[0].mxu0
      %v1115 = vadd.f32 %v1032, %v1114
      %v1116 = vpop.f32.mrb[0].mxu0
      %1117 = vmatprep.mubr.f32.mxu0 0.0
      %1118 = vmatmul.mubr.f32.gmra.mrb[0].mxu0 %v988
      %v1119 = vpop.f32.mrb[0].mxu0
      %v1120 = vadd.f32 %v1032, %v1119
      %v1121 = vpop.f32.mrb[0].mxu0
      %1122 = vmatprep.mubr.f32.mxu0 0.0
      %1123 = vmatmul.mubr.f32.gmra.mrb[0].mxu0 %v989
      %v1124 = vpop.f32.mrb[0].mxu0
      %v1125 = vadd.f32 %v1032, %v1124
      %v1126 = vpop.f32.mrb[0].mxu0
      %1127 = vmatprep.mubr.f32.mxu0 0.0
      %1128 = vmatmul.mubr.f32.gmra.mrb[0].mxu0 %v990
      %v1129 = vpop.f32.mrb[0].mxu0
      %v1130 = vadd.f32 %v1032, %v1129
      %v1131 = vpop.f32.mrb[0].mxu0
      %1132 = vmatprep.mubr.f32.mxu0 0.0
      %1133 = vmatmul.mubr.f32.gmra.mrb[0].mxu0 %v991
      %v1134 = vpop.f32.mrb[0].mxu0
      %v1135 = vadd.f32 %v1032, %v1134
      %v1136 = vpop.f32.mrb[0].mxu0
      %1137 = vmatprep.mubr.f32.mxu0 0.0
      %1138 = vmatmul.mubr.f32.gmra.mrb[0].mxu0 %v992
      %v1139 = vpop.f32.mrb[0].mxu0
      %v1140 = vadd.f32 %v1032, %v1139
      %v1141 = vpop.f32.mrb[0].mxu0
      %1142 = vmatprep.mubr.f32.mxu0 0.0
      %1143 = vmatmul.mubr.f32.gmra.mrb[0].mxu0 %v993
      %v1144 = vpop.f32.mrb[0].mxu0
      %v1145 = vadd.f32 %v1032, %v1144
      %v1146 = vpop.f32.mrb[0].mxu0
      %1147 = vmatprep.mubr.f32.mxu0 0.0
      %1148 = vmatmul.mubr.f32.gmra.mrb[0].mxu0 %v994
      %v1149 = vpop.f32.mrb[0].mxu0
      %v1150 = vadd.f32 %v1032, %v1149
      %v1151 = vpop.f32.mrb[0].mxu0
      %1152 = vmatprep.mubr.f32.mxu0 0.0
      %1153 = vmatmul.mubr.f32.gmra.mrb[0].mxu0 %v995
      %v1154 = vpop.f32.mrb[0].mxu0
      %v1155 = vadd.f32 %v1032, %v1154
      %v1156 = vpop.f32.mrb[0].mxu0
      %1157 = vmatprep.mubr.f32.mxu0 0.0
      %1158 = vmatmul.mubr.f32.gmra.mrb[0].mxu0 %v996
      %v1159 = vpop.f32.mrb[0].mxu0
      %v1160 = vadd.f32 %v1032, %v1159
      %v1161 = vpop.f32.mrb[0].mxu0
      %1162 = vmatprep.mubr.f32.mxu0 0.0
      %1163 = vmatmul.mubr.f32.gmra.mrb[0].mxu0 %v997
      %v1164 = vpop.f32.mrb[0].mxu0
      %v1165 = vadd.f32 %v1032, %v1164
      %v1166 = vpop.f32.mrb[0].mxu0
      %1167 = vmatprep.mubr.f32.mxu0 0.0
      %1168 = vmatmul.mubr.f32.gmra.mrb[0].mxu0 %v998
      %v1169 = vpop.f32.mrb[0].mxu0
      %v1170 = vadd.f32 %v1032, %v1169
      %v1171 = vpop.f32.mrb[0].mxu0
      %1172 = vmatprep.mubr.f32.mxu0 0.0
      %1173 = vmatmul.mubr.f32.gmra.mrb[0].mxu0 %v999
      %v1174 = vpop.f32.mrb[0].mxu0
      %v1175 = vadd.f32 %v1032, %v1174
      %v1176 = vpop.f32.mrb[0].mxu0
      %1177 = vmatprep.mubr.f32.mxu0 0.0
      %1178 = vmatmul.mubr.f32.gmra.mrb[0].mxu0 %v1000
      %v1179 = vpop.f32.mrb[0].mxu0
      %v1180 = vadd.f32 %v1032, %v1179
      %v1181 = vpop.f32.mrb[0].mxu0
      %1182 = vmatprep.mubr.f32.mxu0 0.0
      %1183 = vmatmul.mubr.f32.gmra.mrb[0].mxu0 %v1001
      %v1184 = vpop.f32.mrb[0].mxu0
      %v1185 = vadd.f32 %v1032, %v1184
      %v1186 = vpop.f32.mrb[0].mxu0
      %1187 = vmatprep.mubr.f32.mxu0 0.0
      %1188 = vmatmul.mubr.f32.gmra.mrb[0].mxu0 %v1002
      %v1189 = vpop.f32.mrb[0].mxu0
      %v1190 = vadd.f32 %v1032, %v1189
      %v1191 = vpop.f32.mrb[0].mxu0
      %1192 = vmatprep.mubr.f32.mxu0 0.0
      %1193 = vmatmul.mubr.f32.gmra.mrb[0].mxu0 %v1003
      %v1194 = vpop.f32.mrb[0].mxu0
      %v1195 = vadd.f32 %v1032, %v1194
      %v1196 = vpop.f32.mrb[0].mxu0
      %1197 = vmatprep.mubr.f32.mxu0 0.0
      %1198 = vmatmul.mubr.f32.gmra.mrb[0].mxu0 %v1004
      %v1199 = vpop.f32.mrb[0].mxu0
      %v1200 = vadd.f32 %v1032, %v1199
      %v1201 = vpop.f32.mrb[0].mxu0
      %1202 = vmatprep.mubr.f32.mxu0 0.0
      %1203 = vmatmul.mubr.f32.gmra.mrb[0].mxu0 %v1005
      %v1204 = vpop.f32.mrb[0].mxu0
      %v1205 = vadd.f32 %v1032, %v1204
      %v1206 = vpop.f32.mrb[0].mxu0
      %1207 = vmatprep.mubr.f32.mxu0 0.0
      %1208 = vmatmul.mubr.f32.gmra.mrb[0].mxu0 %v1006
      %v1209 = vpop.f32.mrb[0].mxu0
      %v1210 = vadd.f32 %v1032, %v1209
      %v1211 = vpop.f32.mrb[0].mxu0
      %1212 = vmatprep.mubr.f32.mxu0 0.0
      %1213 = vmatmul.mubr.f32.gmra.mrb[0].mxu0 %v1007
      %v1214 = vpop.f32.mrb[0].mxu0
      %v1215 = vadd.f32 %v1032, %v1214
      %v1216 = vpop.f32.mrb[0].mxu0
      %1217 = vmatprep.mubr.f32.mxu0 0.0
      %1218 = vmatmul.mubr.f32.gmra.mrb[0].mxu0 %v1008
      %v1219 = vpop.f32.mrb[0].mxu0
      %v1220 = vadd.f32 %v1032, %v1219
      %v1221 = vpop.f32.mrb[0].mxu0
      %1222 = vmatprep.mubr.f32.mxu0 0.0
      %1223 = vmatmul.mubr.f32.gmra.mrb[0].mxu0 %v1009
      %v1224 = vpop.f32.mrb[0].mxu0
      %v1225 = vadd.f32 %v1032, %v1224
      %v1226 = vpop.f32.mrb[0].mxu0
      %1227 = vmatprep.mubr.f32.mxu0 0.0
      %1228 = vmatmul.mubr.f32.gmra.mrb[0].mxu0 %v1010
      %v1229 = vpop.f32.mrb[0].mxu0
      %v1230 = vadd.f32 %v1032, %v1229
      %v1231 = vpop.f32.mrb[0].mxu0
      %1232 = vmatprep.mubr.f32.mxu0 0.0
      %1233 = vmatmul.mubr.f32.gmra.mrb[0].mxu0 %v1011
      %v1234 = vpop.f32.mrb[0].mxu0
      %v1235 = vadd.f32 %v1032, %v1234
      %v1236 = vpop.f32.mrb[0].mxu0
      %1237 = vmatprep.mubr.f32.mxu0 0.0
      %1238 = vmatmul.mubr.f32.gmra.mrb[0].mxu0 %v1012
      %v1239 = vpop.f32.mrb[0].mxu0
      %v1240 = vadd.f32 %v1032, %v1239
      %v1241 = vpop.f32.mrb[0].mxu0
      %1242 = vmatprep.mubr.f32.mxu0 0.0
      %1243 = vmatmul.mubr.f32.gmra.mrb[0].mxu0 %v1013
      %v1244 = vpop.f32.mrb[0].mxu0
      %v1245 = vadd.f32 %v1032, %v1244
      %v1246 = vpop.f32.mrb[0].mxu0
      %1247 = vmatprep.mubr.f32.mxu0 0.0
      %1248 = vmatmul.mubr.f32.gmra.mrb[0].mxu0 %v1014
      %v1249 = vpop.f32.mrb[0].mxu0
      %v1250 = vadd.f32 %v1032, %v1249
      %v1251 = vpop.f32.mrb[0].mxu0
      %1252 = vmatprep.mubr.f32.mxu0 0.0
      %1253 = vmatmul.mubr.f32.gmra.mrb[0].mxu0 %v1015
      %v1254 = vpop.f32.mrb[0].mxu0
      %v1255 = vadd.f32 %v1032, %v1254
      %v1256 = vpop.f32.mrb[0].mxu0
      %1257 = vdwg.mxu0
      %v1258 = vmax.f32 %v1100, 0.0
      %v1259 = vmax.f32 %v1105, 0.0
      %v1260 = vmax.f32 %v1110, 0.0
      %v1261 = vmax.f32 %v1115, 0.0
      %v1262 = vmax.f32 %v1120, 0.0
      %v1263 = vmax.f32 %v1125, 0.0
      %v1264 = vmax.f32 %v1130, 0.0
      %v1265 = vmax.f32 %v1135, 0.0
      %v1266 = vmax.f32 %v1140, 0.0
      %v1267 = vmax.f32 %v1145, 0.0
      %v1268 = vmax.f32 %v1150, 0.0
      %v1269 = vmax.f32 %v1155, 0.0
      %v1270 = vmax.f32 %v1160, 0.0
      %v1271 = vmax.f32 %v1165, 0.0
      %v1272 = vmax.f32 %v1170, 0.0
      %v1273 = vmax.f32 %v1175, 0.0
      %v1274 = vmax.f32 %v1180, 0.0
      %v1275 = vmax.f32 %v1185, 0.0
      %v1276 = vmax.f32 %v1190, 0.0
      %v1277 = vmax.f32 %v1195, 0.0
      %v1278 = vmax.f32 %v1200, 0.0
      %v1279 = vmax.f32 %v1205, 0.0
      %v1280 = vmax.f32 %v1210, 0.0
      %v1281 = vmax.f32 %v1215, 0.0
      %v1282 = vmax.f32 %v1220, 0.0
      %v1283 = vmax.f32 %v1225, 0.0
      %v1284 = vmax.f32 %v1230, 0.0
      %v1285 = vmax.f32 %v1235, 0.0
      %v1286 = vmax.f32 %v1240, 0.0
      %v1287 = vmax.f32 %v1245, 0.0
      %v1288 = vmax.f32 %v1250, 0.0
      %v1289 = vmax.f32 %v1255, 0.0
      %v1290 = vld [vmem:[%s1 + $0x228] sm:$0xff]
      %v1291 = vld [vmem:[%s1 + $0x238] sm:$0xff]
      %v1292 = vld [vmem:[%s1 + $0x248] sm:$0xff]
      %v1293 = vld [vmem:[%s1 + $0x258] sm:$0xff]
      %v1294 = vld [vmem:[%s1 + $0x268] sm:$0xff]
      %v1295 = vld [vmem:[%s1 + $0x278] sm:$0xff]
      %v1296 = vld [vmem:[%s1 + $0x288] sm:$0xff]
      %v1297 = vld [vmem:[%s1 + $0x298] sm:$0xff]
      %v1298 = vld [vmem:[%s1 + $0x2a8] sm:$0xff]
      %v1299 = vld [vmem:[%s1 + $0x2b8] sm:$0xff]
      %v1300 = vld [vmem:[%s1 + $0x2c8] sm:$0xff]
      %v1301 = vld [vmem:[%s1 + $0x2d8] sm:$0xff]
      %v1302 = vld [vmem:[%s1 + $0x2e8] sm:$0xff]
      %v1303 = vld [vmem:[%s1 + $0x2f8] sm:$0xff]
      %v1304 = vld [vmem:[%s1 + $0x308] sm:$0xff]
      %v1305 = vld [vmem:[%s1 + $0x318] sm:$0xff]
      %v1306 = vld [vmem:[%s1 + $0x328] ss:$0 sm:$0xff]
      %1307 = vmatprep.subr.mxu0 0.0
      %1308 = vmatpush1.msra.mxu0 %v1290
      %1309 = vmatprep.subr.mxu0 0.0
      %1310 = vmatpush1.msra.mxu0 %v1291
      %1311 = vmatprep.subr.mxu0 0.0
      %1312 = vmatpush1.msra.mxu0 %v1292
      %1313 = vmatprep.subr.mxu0 0.0
      %1314 = vmatpush1.msra.mxu0 %v1293
      %1315 = vmatprep.subr.mxu0 0.0
      %1316 = vmatpush1.msra.mxu0 %v1294
      %1317 = vmatprep.subr.mxu0 0.0
      %1318 = vmatpush1.msra.mxu0 %v1295
      %1319 = vmatprep.subr.mxu0 0.0
      %1320 = vmatpush1.msra.mxu0 %v1296
      %1321 = vmatprep.subr.mxu0 0.0
      %1322 = vmatpush1.msra.mxu0 %v1297
      %1323 = vmatprep.subr.mxu0 0.0
      %1324 = vmatpush1.msra.mxu0 %v1298
      %1325 = vmatprep.subr.mxu0 0.0
      %1326 = vmatpush1.msra.mxu0 %v1299
      %1327 = vmatprep.subr.mxu0 0.0
      %1328 = vmatpush1.msra.mxu0 %v1300
      %1329 = vmatprep.subr.mxu0 0.0
      %1330 = vmatpush1.msra.mxu0 %v1301
      %1331 = vmatprep.subr.mxu0 0.0
      %1332 = vmatpush1.msra.mxu0 %v1302
      %1333 = vmatprep.subr.mxu0 0.0
      %1334 = vmatpush1.msra.mxu0 %v1303
      %1335 = vmatprep.subr.mxu0 0.0
      %1336 = vmatpush1.msra.mxu0 %v1304
      %1337 = vmatprep.subr.mxu0 0.0
      %1338 = vmatpush1.msra.mxu0 %v1305
      %1339 = vmatprep.subr.mxu0 0.0
      %1340 = vmatpush1.msra.mxu0 0.0
      %1341 = vmatprep.subr.mxu0 0.0
      %1342 = vmatpush1.msra.mxu0 0.0
      %1343 = vmatprep.subr.mxu0 0.0
      %1344 = vmatpush1.msra.mxu0 0.0
      %1345 = vmatprep.subr.mxu0 0.0
      %1346 = vmatpush1.msra.mxu0 0.0
      %1347 = vmatprep.subr.mxu0 0.0
      %1348 = vmatpush1.msra.mxu0 0.0
      %1349 = vmatprep.subr.mxu0 0.0
      %1350 = vmatpush1.msra.mxu0 0.0
      %1351 = vmatprep.subr.mxu0 0.0
      %1352 = vmatpush1.msra.mxu0 0.0
      %1353 = vmatprep.subr.mxu0 0.0
      %1354 = vmatpush1.msra.mxu0 0.0
      %1355 = vmatprep.subr.mxu0 0.0
      %1356 = vmatpush1.msra.mxu0 0.0
      %1357 = vmatprep.subr.mxu0 0.0
      %1358 = vmatpush1.msra.mxu0 0.0
      %1359 = vmatprep.subr.mxu0 0.0
      %1360 = vmatpush1.msra.mxu0 0.0
      %1361 = vmatprep.subr.mxu0 0.0
      %1362 = vmatpush1.msra.mxu0 0.0
      %1363 = vmatprep.subr.mxu0 0.0
      %1364 = vmatpush1.msra.mxu0 0.0
      %1365 = vmatprep.subr.mxu0 0.0
      %1366 = vmatpush1.msra.mxu0 0.0
      %1367 = vmatprep.subr.mxu0 0.0
      %1368 = vmatpush1.msra.mxu0 0.0
      %1369 = vmatprep.subr.mxu0 0.0
      %1370 = vmatpush1.msra.mxu0 0.0
      %1371 = vmatprep.mubr.f32.mxu0 0.0
      %1372 = vmatmul.mubr.f32.gmra.mrb[0].mxu0 %v1258
      %v1373 = vpop.f32.mrb[0].mxu0
      %v1374 = vadd.f32 %v1306, %v1373
      %v1375 = vpop.f32.mrb[0].mxu0
      %1376 = vmatprep.mubr.f32.mxu0 0.0
      %1377 = vmatmul.mubr.f32.gmra.mrb[0].mxu0 %v1259
      %v1378 = vpop.f32.mrb[0].mxu0
      %v1379 = vadd.f32 %v1306, %v1378
      %v1380 = vpop.f32.mrb[0].mxu0
      %1381 = vmatprep.mubr.f32.mxu0 0.0
      %1382 = vmatmul.mubr.f32.gmra.mrb[0].mxu0 %v1260
      %v1383 = vpop.f32.mrb[0].mxu0
      %v1384 = vadd.f32 %v1306, %v1383
      %v1385 = vpop.f32.mrb[0].mxu0
      %1386 = vmatprep.mubr.f32.mxu0 0.0
      %1387 = vmatmul.mubr.f32.gmra.mrb[0].mxu0 %v1261
      %v1388 = vpop.f32.mrb[0].mxu0
      %v1389 = vadd.f32 %v1306, %v1388
      %v1390 = vpop.f32.mrb[0].mxu0
      %1391 = vmatprep.mubr.f32.mxu0 0.0
      %1392 = vmatmul.mubr.f32.gmra.mrb[0].mxu0 %v1262
      %v1393 = vpop.f32.mrb[0].mxu0
      %v1394 = vadd.f32 %v1306, %v1393
      %v1395 = vpop.f32.mrb[0].mxu0
      %1396 = vmatprep.mubr.f32.mxu0 0.0
      %1397 = vmatmul.mubr.f32.gmra.mrb[0].mxu0 %v1263
      %v1398 = vpop.f32.mrb[0].mxu0
      %v1399 = vadd.f32 %v1306, %v1398
      %v1400 = vpop.f32.mrb[0].mxu0
      %1401 = vmatprep.mubr.f32.mxu0 0.0
      %1402 = vmatmul.mubr.f32.gmra.mrb[0].mxu0 %v1264
      %v1403 = vpop.f32.mrb[0].mxu0
      %v1404 = vadd.f32 %v1306, %v1403
      %v1405 = vpop.f32.mrb[0].mxu0
      %1406 = vmatprep.mubr.f32.mxu0 0.0
      %1407 = vmatmul.mubr.f32.gmra.mrb[0].mxu0 %v1265
      %v1408 = vpop.f32.mrb[0].mxu0
      %v1409 = vadd.f32 %v1306, %v1408
      %v1410 = vpop.f32.mrb[0].mxu0
      %1411 = vmatprep.mubr.f32.mxu0 0.0
      %1412 = vmatmul.mubr.f32.gmra.mrb[0].mxu0 %v1266
      %v1413 = vpop.f32.mrb[0].mxu0
      %v1414 = vadd.f32 %v1306, %v1413
      %v1415 = vpop.f32.mrb[0].mxu0
      %1416 = vmatprep.mubr.f32.mxu0 0.0
      %1417 = vmatmul.mubr.f32.gmra.mrb[0].mxu0 %v1267
      %v1418 = vpop.f32.mrb[0].mxu0
      %v1419 = vadd.f32 %v1306, %v1418
      %v1420 = vpop.f32.mrb[0].mxu0
      %1421 = vmatprep.mubr.f32.mxu0 0.0
      %1422 = vmatmul.mubr.f32.gmra.mrb[0].mxu0 %v1268
      %v1423 = vpop.f32.mrb[0].mxu0
      %v1424 = vadd.f32 %v1306, %v1423
      %v1425 = vpop.f32.mrb[0].mxu0
      %1426 = vmatprep.mubr.f32.mxu0 0.0
      %1427 = vmatmul.mubr.f32.gmra.mrb[0].mxu0 %v1269
      %v1428 = vpop.f32.mrb[0].mxu0
      %v1429 = vadd.f32 %v1306, %v1428
      %v1430 = vpop.f32.mrb[0].mxu0
      %1431 = vmatprep.mubr.f32.mxu0 0.0
      %1432 = vmatmul.mubr.f32.gmra.mrb[0].mxu0 %v1270
      %v1433 = vpop.f32.mrb[0].mxu0
      %v1434 = vadd.f32 %v1306, %v1433
      %v1435 = vpop.f32.mrb[0].mxu0
      %1436 = vmatprep.mubr.f32.mxu0 0.0
      %1437 = vmatmul.mubr.f32.gmra.mrb[0].mxu0 %v1271
      %v1438 = vpop.f32.mrb[0].mxu0
      %v1439 = vadd.f32 %v1306, %v1438
      %v1440 = vpop.f32.mrb[0].mxu0
      %1441 = vmatprep.mubr.f32.mxu0 0.0
      %1442 = vmatmul.mubr.f32.gmra.mrb[0].mxu0 %v1272
      %v1443 = vpop.f32.mrb[0].mxu0
      %v1444 = vadd.f32 %v1306, %v1443
      %v1445 = vpop.f32.mrb[0].mxu0
      %1446 = vmatprep.mubr.f32.mxu0 0.0
      %1447 = vmatmul.mubr.f32.gmra.mrb[0].mxu0 %v1273
      %v1448 = vpop.f32.mrb[0].mxu0
      %v1449 = vadd.f32 %v1306, %v1448
      %v1450 = vpop.f32.mrb[0].mxu0
      %1451 = vmatprep.mubr.f32.mxu0 0.0
      %1452 = vmatmul.mubr.f32.gmra.mrb[0].mxu0 %v1274
      %v1453 = vpop.f32.mrb[0].mxu0
      %v1454 = vadd.f32 %v1306, %v1453
      %v1455 = vpop.f32.mrb[0].mxu0
      %1456 = vmatprep.mubr.f32.mxu0 0.0
      %1457 = vmatmul.mubr.f32.gmra.mrb[0].mxu0 %v1275
      %v1458 = vpop.f32.mrb[0].mxu0
      %v1459 = vadd.f32 %v1306, %v1458
      %v1460 = vpop.f32.mrb[0].mxu0
      %1461 = vmatprep.mubr.f32.mxu0 0.0
      %1462 = vmatmul.mubr.f32.gmra.mrb[0].mxu0 %v1276
      %v1463 = vpop.f32.mrb[0].mxu0
      %v1464 = vadd.f32 %v1306, %v1463
      %v1465 = vpop.f32.mrb[0].mxu0
      %1466 = vmatprep.mubr.f32.mxu0 0.0
      %1467 = vmatmul.mubr.f32.gmra.mrb[0].mxu0 %v1277
      %v1468 = vpop.f32.mrb[0].mxu0
      %v1469 = vadd.f32 %v1306, %v1468
      %v1470 = vpop.f32.mrb[0].mxu0
      %1471 = vmatprep.mubr.f32.mxu0 0.0
      %1472 = vmatmul.mubr.f32.gmra.mrb[0].mxu0 %v1278
      %v1473 = vpop.f32.mrb[0].mxu0
      %v1474 = vadd.f32 %v1306, %v1473
      %v1475 = vpop.f32.mrb[0].mxu0
      %1476 = vmatprep.mubr.f32.mxu0 0.0
      %1477 = vmatmul.mubr.f32.gmra.mrb[0].mxu0 %v1279
      %v1478 = vpop.f32.mrb[0].mxu0
      %v1479 = vadd.f32 %v1306, %v1478
      %v1480 = vpop.f32.mrb[0].mxu0
      %1481 = vmatprep.mubr.f32.mxu0 0.0
      %1482 = vmatmul.mubr.f32.gmra.mrb[0].mxu0 %v1280
      %v1483 = vpop.f32.mrb[0].mxu0
      %v1484 = vadd.f32 %v1306, %v1483
      %v1485 = vpop.f32.mrb[0].mxu0
      %1486 = vmatprep.mubr.f32.mxu0 0.0
      %1487 = vmatmul.mubr.f32.gmra.mrb[0].mxu0 %v1281
      %v1488 = vpop.f32.mrb[0].mxu0
      %v1489 = vadd.f32 %v1306, %v1488
      %v1490 = vpop.f32.mrb[0].mxu0
      %1491 = vmatprep.mubr.f32.mxu0 0.0
      %1492 = vmatmul.mubr.f32.gmra.mrb[0].mxu0 %v1282
      %v1493 = vpop.f32.mrb[0].mxu0
      %v1494 = vadd.f32 %v1306, %v1493
      %v1495 = vpop.f32.mrb[0].mxu0
      %1496 = vmatprep.mubr.f32.mxu0 0.0
      %1497 = vmatmul.mubr.f32.gmra.mrb[0].mxu0 %v1283
      %v1498 = vpop.f32.mrb[0].mxu0
      %v1499 = vadd.f32 %v1306, %v1498
      %v1500 = vpop.f32.mrb[0].mxu0
      %1501 = vmatprep.mubr.f32.mxu0 0.0
      %1502 = vmatmul.mubr.f32.gmra.mrb[0].mxu0 %v1284
      %v1503 = vpop.f32.mrb[0].mxu0
      %v1504 = vadd.f32 %v1306, %v1503
      %v1505 = vpop.f32.mrb[0].mxu0
      %1506 = vmatprep.mubr.f32.mxu0 0.0
      %1507 = vmatmul.mubr.f32.gmra.mrb[0].mxu0 %v1285
      %v1508 = vpop.f32.mrb[0].mxu0
      %v1509 = vadd.f32 %v1306, %v1508
      %v1510 = vpop.f32.mrb[0].mxu0
      %1511 = vmatprep.mubr.f32.mxu0 0.0
      %1512 = vmatmul.mubr.f32.gmra.mrb[0].mxu0 %v1286
      %v1513 = vpop.f32.mrb[0].mxu0
      %v1514 = vadd.f32 %v1306, %v1513
      %v1515 = vpop.f32.mrb[0].mxu0
      %1516 = vmatprep.mubr.f32.mxu0 0.0
      %1517 = vmatmul.mubr.f32.gmra.mrb[0].mxu0 %v1287
      %v1518 = vpop.f32.mrb[0].mxu0
      %v1519 = vadd.f32 %v1306, %v1518
      %v1520 = vpop.f32.mrb[0].mxu0
      %1521 = vmatprep.mubr.f32.mxu0 0.0
      %1522 = vmatmul.mubr.f32.gmra.mrb[0].mxu0 %v1288
      %v1523 = vpop.f32.mrb[0].mxu0
      %v1524 = vadd.f32 %v1306, %v1523
      %v1525 = vpop.f32.mrb[0].mxu0
      %1526 = vmatprep.mubr.f32.mxu0 0.0
      %1527 = vmatmul.mubr.f32.gmra.mrb[0].mxu0 %v1289
      %v1528 = vpop.f32.mrb[0].mxu0
      %v1529 = vadd.f32 %v1306, %v1528
      %v1530 = vpop.f32.mrb[0].mxu0
      %1531 = vdwg.mxu0
      %v1532 = vmax.f32 %v1374, 0.0
      %v1533 = vmax.f32 %v1379, 0.0
      %v1534 = vmax.f32 %v1384, 0.0
      %v1535 = vmax.f32 %v1389, 0.0
      %v1536 = vmax.f32 %v1394, 0.0
      %v1537 = vmax.f32 %v1399, 0.0
      %v1538 = vmax.f32 %v1404, 0.0
      %v1539 = vmax.f32 %v1409, 0.0
      %v1540 = vmax.f32 %v1414, 0.0
      %v1541 = vmax.f32 %v1419, 0.0
      %v1542 = vmax.f32 %v1424, 0.0
      %v1543 = vmax.f32 %v1429, 0.0
      %v1544 = vmax.f32 %v1434, 0.0
      %v1545 = vmax.f32 %v1439, 0.0
      %v1546 = vmax.f32 %v1444, 0.0
      %v1547 = vmax.f32 %v1449, 0.0
      %v1548 = vmax.f32 %v1454, 0.0
      %v1549 = vmax.f32 %v1459, 0.0
      %v1550 = vmax.f32 %v1464, 0.0
      %v1551 = vmax.f32 %v1469, 0.0
      %v1552 = vmax.f32 %v1474, 0.0
      %v1553 = vmax.f32 %v1479, 0.0
      %v1554 = vmax.f32 %v1484, 0.0
      %v1555 = vmax.f32 %v1489, 0.0
      %v1556 = vmax.f32 %v1494, 0.0
      %v1557 = vmax.f32 %v1499, 0.0
      %v1558 = vmax.f32 %v1504, 0.0
      %v1559 = vmax.f32 %v1509, 0.0
      %v1560 = vmax.f32 %v1514, 0.0
      %v1561 = vmax.f32 %v1519, 0.0
      %v1562 = vmax.f32 %v1524, 0.0
      %v1563 = vmax.f32 %v1529, 0.0
      %v1564 = vld [vmem:[%s1 + $0x338] sm:$0xff]
      %v1565 = vld [vmem:[%s1 + $0x348] sm:$0xff]
      %v1566 = vld [vmem:[%s1 + $0x358] sm:$0xff]
      %v1567 = vld [vmem:[%s1 + $0x368] sm:$0xff]
      %v1568 = vld [vmem:[%s1 + $0x378] sm:$0xff]
      %v1569 = vld [vmem:[%s1 + $0x388] sm:$0xff]
      %v1570 = vld [vmem:[%s1 + $0x398] sm:$0xff]
      %v1571 = vld [vmem:[%s1 + $0x3a8] sm:$0xff]
      %v1572 = vld [vmem:[%s1 + $0x3b8] sm:$0xff]
      %v1573 = vld [vmem:[%s1 + $0x3c8] sm:$0xff]
      %v1574 = vld [vmem:[%s1 + $0x3d8] sm:$0xff]
      %v1575 = vld [vmem:[%s1 + $0x3e8] sm:$0xff]
      %v1576 = vld [vmem:[%s1 + $0x3f8] sm:$0xff]
      %v1577 = vld [vmem:[%s1 + $0x408] sm:$0xff]
      %v1578 = vld [vmem:[%s1 + $0x418] sm:$0xff]
      %v1579 = vld [vmem:[%s1 + $0x428] sm:$0xff]
      %v1580 = vld [vmem:[%s1 + $0x438] ss:$0 sm:$0xff]
      %1581 = vmatprep.subr.mxu0 0.0
      %1582 = vmatpush1.msra.mxu0 %v1564
      %1583 = vmatprep.subr.mxu0 0.0
      %1584 = vmatpush1.msra.mxu0 %v1565
      %1585 = vmatprep.subr.mxu0 0.0
      %1586 = vmatpush1.msra.mxu0 %v1566
      %1587 = vmatprep.subr.mxu0 0.0
      %1588 = vmatpush1.msra.mxu0 %v1567
      %1589 = vmatprep.subr.mxu0 0.0
      %1590 = vmatpush1.msra.mxu0 %v1568
      %1591 = vmatprep.subr.mxu0 0.0
      %1592 = vmatpush1.msra.mxu0 %v1569
      %1593 = vmatprep.subr.mxu0 0.0
      %1594 = vmatpush1.msra.mxu0 %v1570
      %1595 = vmatprep.subr.mxu0 0.0
      %1596 = vmatpush1.msra.mxu0 %v1571
      %1597 = vmatprep.subr.mxu0 0.0
      %1598 = vmatpush1.msra.mxu0 %v1572
      %1599 = vmatprep.subr.mxu0 0.0
      %1600 = vmatpush1.msra.mxu0 %v1573
      %1601 = vmatprep.subr.mxu0 0.0
      %1602 = vmatpush1.msra.mxu0 %v1574
      %1603 = vmatprep.subr.mxu0 0.0
      %1604 = vmatpush1.msra.mxu0 %v1575
      %1605 = vmatprep.subr.mxu0 0.0
      %1606 = vmatpush1.msra.mxu0 %v1576
      %1607 = vmatprep.subr.mxu0 0.0
      %1608 = vmatpush1.msra.mxu0 %v1577
      %1609 = vmatprep.subr.mxu0 0.0
      %1610 = vmatpush1.msra.mxu0 %v1578
      %1611 = vmatprep.subr.mxu0 0.0
      %1612 = vmatpush1.msra.mxu0 %v1579
      %1613 = vmatprep.subr.mxu0 0.0
      %1614 = vmatpush1.msra.mxu0 0.0
      %1615 = vmatprep.subr.mxu0 0.0
      %1616 = vmatpush1.msra.mxu0 0.0
      %1617 = vmatprep.subr.mxu0 0.0
      %1618 = vmatpush1.msra.mxu0 0.0
      %1619 = vmatprep.subr.mxu0 0.0
      %1620 = vmatpush1.msra.mxu0 0.0
      %1621 = vmatprep.subr.mxu0 0.0
      %1622 = vmatpush1.msra.mxu0 0.0
      %1623 = vmatprep.subr.mxu0 0.0
      %1624 = vmatpush1.msra.mxu0 0.0
      %1625 = vmatprep.subr.mxu0 0.0
      %1626 = vmatpush1.msra.mxu0 0.0
      %1627 = vmatprep.subr.mxu0 0.0
      %1628 = vmatpush1.msra.mxu0 0.0
      %1629 = vmatprep.subr.mxu0 0.0
      %1630 = vmatpush1.msra.mxu0 0.0
      %1631 = vmatprep.subr.mxu0 0.0
      %1632 = vmatpush1.msra.mxu0 0.0
      %1633 = vmatprep.subr.mxu0 0.0
      %1634 = vmatpush1.msra.mxu0 0.0
      %1635 = vmatprep.subr.mxu0 0.0
      %1636 = vmatpush1.msra.mxu0 0.0
      %1637 = vmatprep.subr.mxu0 0.0
      %1638 = vmatpush1.msra.mxu0 0.0
      %1639 = vmatprep.subr.mxu0 0.0
      %1640 = vmatpush1.msra.mxu0 0.0
      %1641 = vmatprep.subr.mxu0 0.0
      %1642 = vmatpush1.msra.mxu0 0.0
      %1643 = vmatprep.subr.mxu0 0.0
      %1644 = vmatpush1.msra.mxu0 0.0
      %1645 = vmatprep.mubr.f32.mxu0 0.0
      %1646 = vmatmul.mubr.f32.gmra.mrb[0].mxu0 %v1532
      %v1647 = vpop.f32.mrb[0].mxu0
      %v1648 = vadd.f32 %v1580, %v1647
      %v1649 = vpop.f32.mrb[0].mxu0
      %1650 = vmatprep.mubr.f32.mxu0 0.0
      %1651 = vmatmul.mubr.f32.gmra.mrb[0].mxu0 %v1533
      %v1652 = vpop.f32.mrb[0].mxu0
      %v1653 = vadd.f32 %v1580, %v1652
      %v1654 = vpop.f32.mrb[0].mxu0
      %1655 = vmatprep.mubr.f32.mxu0 0.0
      %1656 = vmatmul.mubr.f32.gmra.mrb[0].mxu0 %v1534
      %v1657 = vpop.f32.mrb[0].mxu0
      %v1658 = vadd.f32 %v1580, %v1657
      %v1659 = vpop.f32.mrb[0].mxu0
      %1660 = vmatprep.mubr.f32.mxu0 0.0
      %1661 = vmatmul.mubr.f32.gmra.mrb[0].mxu0 %v1535
      %v1662 = vpop.f32.mrb[0].mxu0
      %v1663 = vadd.f32 %v1580, %v1662
      %v1664 = vpop.f32.mrb[0].mxu0
      %1665 = vmatprep.mubr.f32.mxu0 0.0
      %1666 = vmatmul.mubr.f32.gmra.mrb[0].mxu0 %v1536
      %v1667 = vpop.f32.mrb[0].mxu0
      %v1668 = vadd.f32 %v1580, %v1667
      %v1669 = vpop.f32.mrb[0].mxu0
      %1670 = vmatprep.mubr.f32.mxu0 0.0
      %1671 = vmatmul.mubr.f32.gmra.mrb[0].mxu0 %v1537
      %v1672 = vpop.f32.mrb[0].mxu0
      %v1673 = vadd.f32 %v1580, %v1672
      %v1674 = vpop.f32.mrb[0].mxu0
      %1675 = vmatprep.mubr.f32.mxu0 0.0
      %1676 = vmatmul.mubr.f32.gmra.mrb[0].mxu0 %v1538
      %v1677 = vpop.f32.mrb[0].mxu0
      %v1678 = vadd.f32 %v1580, %v1677
      %v1679 = vpop.f32.mrb[0].mxu0
      %1680 = vmatprep.mubr.f32.mxu0 0.0
      %1681 = vmatmul.mubr.f32.gmra.mrb[0].mxu0 %v1539
      %v1682 = vpop.f32.mrb[0].mxu0
      %v1683 = vadd.f32 %v1580, %v1682
      %v1684 = vpop.f32.mrb[0].mxu0
      %1685 = vmatprep.mubr.f32.mxu0 0.0
      %1686 = vmatmul.mubr.f32.gmra.mrb[0].mxu0 %v1540
      %v1687 = vpop.f32.mrb[0].mxu0
      %v1688 = vadd.f32 %v1580, %v1687
      %v1689 = vpop.f32.mrb[0].mxu0
      %1690 = vmatprep.mubr.f32.mxu0 0.0
      %1691 = vmatmul.mubr.f32.gmra.mrb[0].mxu0 %v1541
      %v1692 = vpop.f32.mrb[0].mxu0
      %v1693 = vadd.f32 %v1580, %v1692
      %v1694 = vpop.f32.mrb[0].mxu0
      %1695 = vmatprep.mubr.f32.mxu0 0.0
      %1696 = vmatmul.mubr.f32.gmra.mrb[0].mxu0 %v1542
      %v1697 = vpop.f32.mrb[0].mxu0
      %v1698 = vadd.f32 %v1580, %v1697
      %v1699 = vpop.f32.mrb[0].mxu0
      %1700 = vmatprep.mubr.f32.mxu0 0.0
      %1701 = vmatmul.mubr.f32.gmra.mrb[0].mxu0 %v1543
      %v1702 = vpop.f32.mrb[0].mxu0
      %v1703 = vadd.f32 %v1580, %v1702
      %v1704 = vpop.f32.mrb[0].mxu0
      %1705 = vmatprep.mubr.f32.mxu0 0.0
      %1706 = vmatmul.mubr.f32.gmra.mrb[0].mxu0 %v1544
      %v1707 = vpop.f32.mrb[0].mxu0
      %v1708 = vadd.f32 %v1580, %v1707
      %v1709 = vpop.f32.mrb[0].mxu0
      %1710 = vmatprep.mubr.f32.mxu0 0.0
      %1711 = vmatmul.mubr.f32.gmra.mrb[0].mxu0 %v1545
      %v1712 = vpop.f32.mrb[0].mxu0
      %v1713 = vadd.f32 %v1580, %v1712
      %v1714 = vpop.f32.mrb[0].mxu0
      %1715 = vmatprep.mubr.f32.mxu0 0.0
      %1716 = vmatmul.mubr.f32.gmra.mrb[0].mxu0 %v1546
      %v1717 = vpop.f32.mrb[0].mxu0
      %v1718 = vadd.f32 %v1580, %v1717
      %v1719 = vpop.f32.mrb[0].mxu0
      %1720 = vmatprep.mubr.f32.mxu0 0.0
      %1721 = vmatmul.mubr.f32.gmra.mrb[0].mxu0 %v1547
      %v1722 = vpop.f32.mrb[0].mxu0
      %v1723 = vadd.f32 %v1580, %v1722
      %v1724 = vpop.f32.mrb[0].mxu0
      %1725 = vmatprep.mubr.f32.mxu0 0.0
      %1726 = vmatmul.mubr.f32.gmra.mrb[0].mxu0 %v1548
      %v1727 = vpop.f32.mrb[0].mxu0
      %v1728 = vadd.f32 %v1580, %v1727
      %v1729 = vpop.f32.mrb[0].mxu0
      %1730 = vmatprep.mubr.f32.mxu0 0.0
      %1731 = vmatmul.mubr.f32.gmra.mrb[0].mxu0 %v1549
      %v1732 = vpop.f32.mrb[0].mxu0
      %v1733 = vadd.f32 %v1580, %v1732
      %v1734 = vpop.f32.mrb[0].mxu0
      %1735 = vmatprep.mubr.f32.mxu0 0.0
      %1736 = vmatmul.mubr.f32.gmra.mrb[0].mxu0 %v1550
      %v1737 = vpop.f32.mrb[0].mxu0
      %v1738 = vadd.f32 %v1580, %v1737
      %v1739 = vpop.f32.mrb[0].mxu0
      %1740 = vmatprep.mubr.f32.mxu0 0.0
      %1741 = vmatmul.mubr.f32.gmra.mrb[0].mxu0 %v1551
      %v1742 = vpop.f32.mrb[0].mxu0
      %v1743 = vadd.f32 %v1580, %v1742
      %v1744 = vpop.f32.mrb[0].mxu0
      %1745 = vmatprep.mubr.f32.mxu0 0.0
      %1746 = vmatmul.mubr.f32.gmra.mrb[0].mxu0 %v1552
      %v1747 = vpop.f32.mrb[0].mxu0
      %v1748 = vadd.f32 %v1580, %v1747
      %v1749 = vpop.f32.mrb[0].mxu0
      %1750 = vmatprep.mubr.f32.mxu0 0.0
      %1751 = vmatmul.mubr.f32.gmra.mrb[0].mxu0 %v1553
      %v1752 = vpop.f32.mrb[0].mxu0
      %v1753 = vadd.f32 %v1580, %v1752
      %v1754 = vpop.f32.mrb[0].mxu0
      %1755 = vmatprep.mubr.f32.mxu0 0.0
      %1756 = vmatmul.mubr.f32.gmra.mrb[0].mxu0 %v1554
      %v1757 = vpop.f32.mrb[0].mxu0
      %v1758 = vadd.f32 %v1580, %v1757
      %v1759 = vpop.f32.mrb[0].mxu0
      %1760 = vmatprep.mubr.f32.mxu0 0.0
      %1761 = vmatmul.mubr.f32.gmra.mrb[0].mxu0 %v1555
      %v1762 = vpop.f32.mrb[0].mxu0
      %v1763 = vadd.f32 %v1580, %v1762
      %v1764 = vpop.f32.mrb[0].mxu0
      %1765 = vmatprep.mubr.f32.mxu0 0.0
      %1766 = vmatmul.mubr.f32.gmra.mrb[0].mxu0 %v1556
      %v1767 = vpop.f32.mrb[0].mxu0
      %v1768 = vadd.f32 %v1580, %v1767
      %v1769 = vpop.f32.mrb[0].mxu0
      %1770 = vmatprep.mubr.f32.mxu0 0.0
      %1771 = vmatmul.mubr.f32.gmra.mrb[0].mxu0 %v1557
      %v1772 = vpop.f32.mrb[0].mxu0
      %v1773 = vadd.f32 %v1580, %v1772
      %v1774 = vpop.f32.mrb[0].mxu0
      %1775 = vmatprep.mubr.f32.mxu0 0.0
      %1776 = vmatmul.mubr.f32.gmra.mrb[0].mxu0 %v1558
      %v1777 = vpop.f32.mrb[0].mxu0
      %v1778 = vadd.f32 %v1580, %v1777
      %v1779 = vpop.f32.mrb[0].mxu0
      %1780 = vmatprep.mubr.f32.mxu0 0.0
      %1781 = vmatmul.mubr.f32.gmra.mrb[0].mxu0 %v1559
      %v1782 = vpop.f32.mrb[0].mxu0
      %v1783 = vadd.f32 %v1580, %v1782
      %v1784 = vpop.f32.mrb[0].mxu0
      %1785 = vmatprep.mubr.f32.mxu0 0.0
      %1786 = vmatmul.mubr.f32.gmra.mrb[0].mxu0 %v1560
      %v1787 = vpop.f32.mrb[0].mxu0
      %v1788 = vadd.f32 %v1580, %v1787
      %v1789 = vpop.f32.mrb[0].mxu0
      %1790 = vmatprep.mubr.f32.mxu0 0.0
      %1791 = vmatmul.mubr.f32.gmra.mrb[0].mxu0 %v1561
      %v1792 = vpop.f32.mrb[0].mxu0
      %v1793 = vadd.f32 %v1580, %v1792
      %v1794 = vpop.f32.mrb[0].mxu0
      %1795 = vmatprep.mubr.f32.mxu0 0.0
      %1796 = vmatmul.mubr.f32.gmra.mrb[0].mxu0 %v1562
      %v1797 = vpop.f32.mrb[0].mxu0
      %v1798 = vadd.f32 %v1580, %v1797
      %v1799 = vpop.f32.mrb[0].mxu0
      %1800 = vmatprep.mubr.f32.mxu0 0.0
      %1801 = vmatmul.mubr.f32.gmra.mrb[0].mxu0 %v1563
      %v1802 = vpop.f32.mrb[0].mxu0
      %v1803 = vadd.f32 %v1580, %v1802
      %v1804 = vpop.f32.mrb[0].mxu0
      %1805 = vdwg.mxu0
      %1822 = vrot.lane.b32.xlu0 %v906, 1
      %v1823 = vpop.permute.xlu0 %1822
      %1824 = vrot.lane.b32.xlu0 %v911, 1
      %v1825 = vpop.permute.xlu0 %1824
      %1826 = vrot.lane.b32.xlu0 %v916, 1
      %v1827 = vpop.permute.xlu0 %1826
      %1828 = vrot.lane.b32.xlu0 %v921, 1
      %v1829 = vpop.permute.xlu0 %1828
      %1830 = vrot.lane.b32.xlu0 %v926, 1
      %v1831 = vpop.permute.xlu0 %1830
      %1832 = vrot.lane.b32.xlu0 %v931, 1
      %v1833 = vpop.permute.xlu0 %1832
      %1834 = vrot.lane.b32.xlu0 %v936, 1
      %v1835 = vpop.permute.xlu0 %1834
      %1836 = vrot.lane.b32.xlu0 %v941, 1
      %v1837 = vpop.permute.xlu0 %1836
      %1838 = vrot.lane.b32.xlu0 %v946, 1
      %v1839 = vpop.permute.xlu0 %1838
      %1840 = vrot.lane.b32.xlu0 %v951, 1
      %v1841 = vpop.permute.xlu0 %1840
      %1842 = vrot.lane.b32.xlu0 %v956, 1
      %v1843 = vpop.permute.xlu0 %1842
      %1844 = vrot.lane.b32.xlu0 %v961, 1
      %v1845 = vpop.permute.xlu0 %1844
      %1846 = vrot.lane.b32.xlu0 %v966, 1
      %v1847 = vpop.permute.xlu0 %1846
      %1848 = vrot.lane.b32.xlu0 %v971, 1
      %v1849 = vpop.permute.xlu0 %1848
      %1850 = vrot.lane.b32.xlu0 %v976, 1
      %v1851 = vpop.permute.xlu0 %1850
      %1852 = vrot.lane.b32.xlu0 %v981, 1
      %v1853 = vpop.permute.xlu0 %1852
      %v1870 = vsub.f32 %v906, %v1823
      %v1871 = vsub.f32 %v911, %v1825
      %v1872 = vsub.f32 %v916, %v1827
      %v1873 = vsub.f32 %v921, %v1829
      %v1874 = vsub.f32 %v926, %v1831
      %v1875 = vsub.f32 %v931, %v1833
      %v1876 = vsub.f32 %v936, %v1835
      %v1877 = vsub.f32 %v941, %v1837
      %v1878 = vsub.f32 %v946, %v1839
      %v1879 = vsub.f32 %v951, %v1841
      %v1880 = vsub.f32 %v956, %v1843
      %v1881 = vsub.f32 %v961, %v1845
      %v1882 = vsub.f32 %v966, %v1847
      %v1883 = vsub.f32 %v971, %v1849
      %v1884 = vsub.f32 %v976, %v1851
      %v1885 = vsub.f32 %v981, %v1853
      %v1886 = vxor.u32 %v1870, 2147483648
      %v1887 = vxor.u32 %v1871, 2147483648
      %v1888 = vxor.u32 %v1872, 2147483648
      %v1889 = vxor.u32 %v1873, 2147483648
      %v1890 = vxor.u32 %v1874, 2147483648
      %v1891 = vxor.u32 %v1875, 2147483648
      %v1892 = vxor.u32 %v1876, 2147483648
      %v1893 = vxor.u32 %v1877, 2147483648
      %v1894 = vxor.u32 %v1878, 2147483648
      %v1895 = vxor.u32 %v1879, 2147483648
      %v1896 = vxor.u32 %v1880, 2147483648
      %v1897 = vxor.u32 %v1881, 2147483648
      %v1898 = vxor.u32 %v1882, 2147483648
      %v1899 = vxor.u32 %v1883, 2147483648
      %v1900 = vxor.u32 %v1884, 2147483648
      %v1901 = vxor.u32 %v1885, 2147483648
      %v1902 = vmul.f32 %v1886, 1.442695
      %v1903 = vpow.pop %v1902
      %v1904 = vmul.f32 %v1887, 1.442695
      %v1905 = vpow.pop %v1904
      %v1906 = vmul.f32 %v1888, 1.442695
      %v1907 = vpow.pop %v1906
      %v1908 = vmul.f32 %v1889, 1.442695
      %v1909 = vpow.pop %v1908
      %v1910 = vmul.f32 %v1890, 1.442695
      %v1911 = vpow.pop %v1910
      %v1912 = vmul.f32 %v1891, 1.442695
      %v1913 = vpow.pop %v1912
      %v1914 = vmul.f32 %v1892, 1.442695
      %v1915 = vpow.pop %v1914
      %v1916 = vmul.f32 %v1893, 1.442695
      %v1917 = vpow.pop %v1916
      %v1918 = vmul.f32 %v1894, 1.442695
      %v1919 = vpow.pop %v1918
      %v1920 = vmul.f32 %v1895, 1.442695
      %v1921 = vpow.pop %v1920
      %v1922 = vmul.f32 %v1896, 1.442695
      %v1923 = vpow.pop %v1922
      %v1924 = vmul.f32 %v1897, 1.442695
      %v1925 = vpow.pop %v1924
      %v1926 = vmul.f32 %v1898, 1.442695
      %v1927 = vpow.pop %v1926
      %v1928 = vmul.f32 %v1899, 1.442695
      %v1929 = vpow.pop %v1928
      %v1930 = vmul.f32 %v1900, 1.442695
      %v1931 = vpow.pop %v1930
      %v1932 = vmul.f32 %v1901, 1.442695
      %v1933 = vpow.pop %v1932
      %v1934 = vadd.f32 %v1903, 1.0
      %v1935 = vadd.f32 %v1905, 1.0
      %v1936 = vadd.f32 %v1907, 1.0
      %v1937 = vadd.f32 %v1909, 1.0
      %v1938 = vadd.f32 %v1911, 1.0
      %v1939 = vadd.f32 %v1913, 1.0
      %v1940 = vadd.f32 %v1915, 1.0
      %v1941 = vadd.f32 %v1917, 1.0
      %v1942 = vadd.f32 %v1919, 1.0
      %v1943 = vadd.f32 %v1921, 1.0
      %v1944 = vadd.f32 %v1923, 1.0
      %v1945 = vadd.f32 %v1925, 1.0
      %v1946 = vadd.f32 %v1927, 1.0
      %v1947 = vadd.f32 %v1929, 1.0
      %v1948 = vadd.f32 %v1931, 1.0
      %v1949 = vadd.f32 %v1933, 1.0
      %v1950 = vrcp.pop %v1934
      %v1951 = vmul.f32 1.0, %v1950
      %v1952 = vrcp.pop %v1935
      %v1953 = vmul.f32 1.0, %v1952
      %v1954 = vrcp.pop %v1936
      %v1955 = vmul.f32 1.0, %v1954
      %v1956 = vrcp.pop %v1937
      %v1957 = vmul.f32 1.0, %v1956
      %v1958 = vrcp.pop %v1938
      %v1959 = vmul.f32 1.0, %v1958
      %v1960 = vrcp.pop %v1939
      %v1961 = vmul.f32 1.0, %v1960
      %v1962 = vrcp.pop %v1940
      %v1963 = vmul.f32 1.0, %v1962
      %v1964 = vrcp.pop %v1941
      %v1965 = vmul.f32 1.0, %v1964
      %v1966 = vrcp.pop %v1942
      %v1967 = vmul.f32 1.0, %v1966
      %v1968 = vrcp.pop %v1943
      %v1969 = vmul.f32 1.0, %v1968
      %v1970 = vrcp.pop %v1944
      %v1971 = vmul.f32 1.0, %v1970
      %v1972 = vrcp.pop %v1945
      %v1973 = vmul.f32 1.0, %v1972
      %v1974 = vrcp.pop %v1946
      %v1975 = vmul.f32 1.0, %v1974
      %v1976 = vrcp.pop %v1947
      %v1977 = vmul.f32 1.0, %v1976
      %v1978 = vrcp.pop %v1948
      %v1979 = vmul.f32 1.0, %v1978
      %v1980 = vrcp.pop %v1949
      %v1981 = vmul.f32 1.0, %v1980
      %v1982 = vsub.f32 1.0, %v1951
      %v1983 = vsub.f32 1.0, %v1953
      %v1984 = vsub.f32 1.0, %v1955
      %v1985 = vsub.f32 1.0, %v1957
      %v1986 = vsub.f32 1.0, %v1959
      %v1987 = vsub.f32 1.0, %v1961
      %v1988 = vsub.f32 1.0, %v1963
      %v1989 = vsub.f32 1.0, %v1965
      %v1990 = vsub.f32 1.0, %v1967
      %v1991 = vsub.f32 1.0, %v1969
      %v1992 = vsub.f32 1.0, %v1971
      %v1993 = vsub.f32 1.0, %v1973
      %v1994 = vsub.f32 1.0, %v1975
      %v1995 = vsub.f32 1.0, %v1977
      %v1996 = vsub.f32 1.0, %v1979
      %v1997 = vsub.f32 1.0, %v1981
      %v1998 = vxor.u32 %v1648, 2147483648
      %v1999 = vxor.u32 %v1653, 2147483648
      %v2000 = vxor.u32 %v1658, 2147483648
      %v2001 = vxor.u32 %v1663, 2147483648
      %v2002 = vxor.u32 %v1668, 2147483648
      %v2003 = vxor.u32 %v1673, 2147483648
      %v2004 = vxor.u32 %v1678, 2147483648
      %v2005 = vxor.u32 %v1683, 2147483648
      %v2006 = vxor.u32 %v1688, 2147483648
      %v2007 = vxor.u32 %v1693, 2147483648
      %v2008 = vxor.u32 %v1698, 2147483648
      %v2009 = vxor.u32 %v1703, 2147483648
      %v2010 = vxor.u32 %v1708, 2147483648
      %v2011 = vxor.u32 %v1713, 2147483648
      %v2012 = vxor.u32 %v1718, 2147483648
      %v2013 = vxor.u32 %v1723, 2147483648
      %v2014 = vmul.f32 %v1998, 1.442695
      %v2015 = vpow.pop %v2014
      %v2016 = vmul.f32 %v1999, 1.442695
      %v2017 = vpow.pop %v2016
      %v2018 = vmul.f32 %v2000, 1.442695
      %v2019 = vpow.pop %v2018
      %v2020 = vmul.f32 %v2001, 1.442695
      %v2021 = vpow.pop %v2020
      %v2022 = vmul.f32 %v2002, 1.442695
      %v2023 = vpow.pop %v2022
      %v2024 = vmul.f32 %v2003, 1.442695
      %v2025 = vpow.pop %v2024
      %v2026 = vmul.f32 %v2004, 1.442695
      %v2027 = vpow.pop %v2026
      %v2028 = vmul.f32 %v2005, 1.442695
      %v2029 = vpow.pop %v2028
      %v2030 = vmul.f32 %v2006, 1.442695
      %v2031 = vpow.pop %v2030
      %v2032 = vmul.f32 %v2007, 1.442695
      %v2033 = vpow.pop %v2032
      %v2034 = vmul.f32 %v2008, 1.442695
      %v2035 = vpow.pop %v2034
      %v2036 = vmul.f32 %v2009, 1.442695
      %v2037 = vpow.pop %v2036
      %v2038 = vmul.f32 %v2010, 1.442695
      %v2039 = vpow.pop %v2038
      %v2040 = vmul.f32 %v2011, 1.442695
      %v2041 = vpow.pop %v2040
      %v2042 = vmul.f32 %v2012, 1.442695
      %v2043 = vpow.pop %v2042
      %v2044 = vmul.f32 %v2013, 1.442695
      %v2045 = vpow.pop %v2044
      %v2046 = vadd.f32 %v2015, 1.0
      %v2047 = vadd.f32 %v2017, 1.0
      %v2048 = vadd.f32 %v2019, 1.0
      %v2049 = vadd.f32 %v2021, 1.0
      %v2050 = vadd.f32 %v2023, 1.0
      %v2051 = vadd.f32 %v2025, 1.0
      %v2052 = vadd.f32 %v2027, 1.0
      %v2053 = vadd.f32 %v2029, 1.0
      %v2054 = vadd.f32 %v2031, 1.0
      %v2055 = vadd.f32 %v2033, 1.0
      %v2056 = vadd.f32 %v2035, 1.0
      %v2057 = vadd.f32 %v2037, 1.0
      %v2058 = vadd.f32 %v2039, 1.0
      %v2059 = vadd.f32 %v2041, 1.0
      %v2060 = vadd.f32 %v2043, 1.0
      %v2061 = vadd.f32 %v2045, 1.0
      %v2062 = vrcp.pop %v2046
      %v2063 = vmul.f32 1.0, %v2062
      %v2064 = vrcp.pop %v2047
      %v2065 = vmul.f32 1.0, %v2064
      %v2066 = vrcp.pop %v2048
      %v2067 = vmul.f32 1.0, %v2066
      %v2068 = vrcp.pop %v2049
      %v2069 = vmul.f32 1.0, %v2068
      %v2070 = vrcp.pop %v2050
      %v2071 = vmul.f32 1.0, %v2070
      %v2072 = vrcp.pop %v2051
      %v2073 = vmul.f32 1.0, %v2072
      %v2074 = vrcp.pop %v2052
      %v2075 = vmul.f32 1.0, %v2074
      %v2076 = vrcp.pop %v2053
      %v2077 = vmul.f32 1.0, %v2076
      %v2078 = vrcp.pop %v2054
      %v2079 = vmul.f32 1.0, %v2078
      %v2080 = vrcp.pop %v2055
      %v2081 = vmul.f32 1.0, %v2080
      %v2082 = vrcp.pop %v2056
      %v2083 = vmul.f32 1.0, %v2082
      %v2084 = vrcp.pop %v2057
      %v2085 = vmul.f32 1.0, %v2084
      %v2086 = vrcp.pop %v2058
      %v2087 = vmul.f32 1.0, %v2086
      %v2088 = vrcp.pop %v2059
      %v2089 = vmul.f32 1.0, %v2088
      %v2090 = vrcp.pop %v2060
      %v2091 = vmul.f32 1.0, %v2090
      %v2092 = vrcp.pop %v2061
      %v2093 = vmul.f32 1.0, %v2092
      %v2094 = vadd.f32 %v2063, 0.0001
      %v2095 = vadd.f32 %v2065, 0.0001
      %v2096 = vadd.f32 %v2067, 0.0001
      %v2097 = vadd.f32 %v2069, 0.0001
      %v2098 = vadd.f32 %v2071, 0.0001
      %v2099 = vadd.f32 %v2073, 0.0001
      %v2100 = vadd.f32 %v2075, 0.0001
      %v2101 = vadd.f32 %v2077, 0.0001
      %v2102 = vadd.f32 %v2079, 0.0001
      %v2103 = vadd.f32 %v2081, 0.0001
      %v2104 = vadd.f32 %v2083, 0.0001
      %v2105 = vadd.f32 %v2085, 0.0001
      %v2106 = vadd.f32 %v2087, 0.0001
      %v2107 = vadd.f32 %v2089, 0.0001
      %v2108 = vadd.f32 %v2091, 0.0001
      %v2109 = vadd.f32 %v2093, 0.0001
      %v2110 = vxor.u32 %v1728, 2147483648
      %v2111 = vxor.u32 %v1733, 2147483648
      %v2112 = vxor.u32 %v1738, 2147483648
      %v2113 = vxor.u32 %v1743, 2147483648
      %v2114 = vxor.u32 %v1748, 2147483648
      %v2115 = vxor.u32 %v1753, 2147483648
      %v2116 = vxor.u32 %v1758, 2147483648
      %v2117 = vxor.u32 %v1763, 2147483648
      %v2118 = vxor.u32 %v1768, 2147483648
      %v2119 = vxor.u32 %v1773, 2147483648
      %v2120 = vxor.u32 %v1778, 2147483648
      %v2121 = vxor.u32 %v1783, 2147483648
      %v2122 = vxor.u32 %v1788, 2147483648
      %v2123 = vxor.u32 %v1793, 2147483648
      %v2124 = vxor.u32 %v1798, 2147483648
      %v2125 = vxor.u32 %v1803, 2147483648
      %v2126 = vmul.f32 %v2110, 1.442695
      %v2127 = vpow.pop %v2126
      %v2128 = vmul.f32 %v2111, 1.442695
      %v2129 = vpow.pop %v2128
      %v2130 = vmul.f32 %v2112, 1.442695
      %v2131 = vpow.pop %v2130
      %v2132 = vmul.f32 %v2113, 1.442695
      %v2133 = vpow.pop %v2132
      %v2134 = vmul.f32 %v2114, 1.442695
      %v2135 = vpow.pop %v2134
      %v2136 = vmul.f32 %v2115, 1.442695
      %v2137 = vpow.pop %v2136
      %v2138 = vmul.f32 %v2116, 1.442695
      %v2139 = vpow.pop %v2138
      %v2140 = vmul.f32 %v2117, 1.442695
      %v2141 = vpow.pop %v2140
      %v2142 = vmul.f32 %v2118, 1.442695
      %v2143 = vpow.pop %v2142
      %v2144 = vmul.f32 %v2119, 1.442695
      %v2145 = vpow.pop %v2144
      %v2146 = vmul.f32 %v2120, 1.442695
      %v2147 = vpow.pop %v2146
      %v2148 = vmul.f32 %v2121, 1.442695
      %v2149 = vpow.pop %v2148
      %v2150 = vmul.f32 %v2122, 1.442695
      %v2151 = vpow.pop %v2150
      %v2152 = vmul.f32 %v2123, 1.442695
      %v2153 = vpow.pop %v2152
      %v2154 = vmul.f32 %v2124, 1.442695
      %v2155 = vpow.pop %v2154
      %v2156 = vmul.f32 %v2125, 1.442695
      %v2157 = vpow.pop %v2156
      %v2158 = vadd.f32 %v2127, 1.0
      %v2159 = vadd.f32 %v2129, 1.0
      %v2160 = vadd.f32 %v2131, 1.0
      %v2161 = vadd.f32 %v2133, 1.0
      %v2162 = vadd.f32 %v2135, 1.0
      %v2163 = vadd.f32 %v2137, 1.0
      %v2164 = vadd.f32 %v2139, 1.0
      %v2165 = vadd.f32 %v2141, 1.0
      %v2166 = vadd.f32 %v2143, 1.0
      %v2167 = vadd.f32 %v2145, 1.0
      %v2168 = vadd.f32 %v2147, 1.0
      %v2169 = vadd.f32 %v2149, 1.0
      %v2170 = vadd.f32 %v2151, 1.0
      %v2171 = vadd.f32 %v2153, 1.0
      %v2172 = vadd.f32 %v2155, 1.0
      %v2173 = vadd.f32 %v2157, 1.0
      %v2174 = vrcp.pop %v2158
      %v2175 = vmul.f32 1.0, %v2174
      %v2176 = vrcp.pop %v2159
      %v2177 = vmul.f32 1.0, %v2176
      %v2178 = vrcp.pop %v2160
      %v2179 = vmul.f32 1.0, %v2178
      %v2180 = vrcp.pop %v2161
      %v2181 = vmul.f32 1.0, %v2180
      %v2182 = vrcp.pop %v2162
      %v2183 = vmul.f32 1.0, %v2182
      %v2184 = vrcp.pop %v2163
      %v2185 = vmul.f32 1.0, %v2184
      %v2186 = vrcp.pop %v2164
      %v2187 = vmul.f32 1.0, %v2186
      %v2188 = vrcp.pop %v2165
      %v2189 = vmul.f32 1.0, %v2188
      %v2190 = vrcp.pop %v2166
      %v2191 = vmul.f32 1.0, %v2190
      %v2192 = vrcp.pop %v2167
      %v2193 = vmul.f32 1.0, %v2192
      %v2194 = vrcp.pop %v2168
      %v2195 = vmul.f32 1.0, %v2194
      %v2196 = vrcp.pop %v2169
      %v2197 = vmul.f32 1.0, %v2196
      %v2198 = vrcp.pop %v2170
      %v2199 = vmul.f32 1.0, %v2198
      %v2200 = vrcp.pop %v2171
      %v2201 = vmul.f32 1.0, %v2200
      %v2202 = vrcp.pop %v2172
      %v2203 = vmul.f32 1.0, %v2202
      %v2204 = vrcp.pop %v2173
      %v2205 = vmul.f32 1.0, %v2204
      %v2206 = vadd.f32 %v2175, 0.0001
      %v2207 = vadd.f32 %v2177, 0.0001
      %v2208 = vadd.f32 %v2179, 0.0001
      %v2209 = vadd.f32 %v2181, 0.0001
      %v2210 = vadd.f32 %v2183, 0.0001
      %v2211 = vadd.f32 %v2185, 0.0001
      %v2212 = vadd.f32 %v2187, 0.0001
      %v2213 = vadd.f32 %v2189, 0.0001
      %v2214 = vadd.f32 %v2191, 0.0001
      %v2215 = vadd.f32 %v2193, 0.0001
      %v2216 = vadd.f32 %v2195, 0.0001
      %v2217 = vadd.f32 %v2197, 0.0001
      %v2218 = vadd.f32 %v2199, 0.0001
      %v2219 = vadd.f32 %v2201, 0.0001
      %v2220 = vadd.f32 %v2203, 0.0001
      %v2221 = vadd.f32 %v2205, 0.0001
      %2238 = vrot.lane.b32.xlu0 %v1982, 127
      %v2239 = vpop.permute.xlu0 %2238
      %2240 = vrot.lane.b32.xlu0 %v1983, 127
      %v2241 = vpop.permute.xlu0 %2240
      %2242 = vrot.lane.b32.xlu0 %v1984, 127
      %v2243 = vpop.permute.xlu0 %2242
      %2244 = vrot.lane.b32.xlu0 %v1985, 127
      %v2245 = vpop.permute.xlu0 %2244
      %2246 = vrot.lane.b32.xlu0 %v1986, 127
      %v2247 = vpop.permute.xlu0 %2246
      %2248 = vrot.lane.b32.xlu0 %v1987, 127
      %v2249 = vpop.permute.xlu0 %2248
      %2250 = vrot.lane.b32.xlu0 %v1988, 127
      %v2251 = vpop.permute.xlu0 %2250
      %2252 = vrot.lane.b32.xlu0 %v1989, 127
      %v2253 = vpop.permute.xlu0 %2252
      %2254 = vrot.lane.b32.xlu0 %v1990, 127
      %v2255 = vpop.permute.xlu0 %2254
      %2256 = vrot.lane.b32.xlu0 %v1991, 127
      %v2257 = vpop.permute.xlu0 %2256
      %2258 = vrot.lane.b32.xlu0 %v1992, 127
      %v2259 = vpop.permute.xlu0 %2258
      %2260 = vrot.lane.b32.xlu0 %v1993, 127
      %v2261 = vpop.permute.xlu0 %2260
      %2262 = vrot.lane.b32.xlu0 %v1994, 127
      %v2263 = vpop.permute.xlu0 %2262
      %2264 = vrot.lane.b32.xlu0 %v1995, 127
      %v2265 = vpop.permute.xlu0 %2264
      %2266 = vrot.lane.b32.xlu0 %v1996, 127
      %v2267 = vpop.permute.xlu0 %2266
      %2268 = vrot.lane.b32.xlu0 %v1997, 127
      %v2269 = vpop.permute.xlu0 %2268
      %v2286 = vmul.f32 %v2094, %v2239
      %v2287 = vmul.f32 %v2095, %v2241
      %v2288 = vmul.f32 %v2096, %v2243
      %v2289 = vmul.f32 %v2097, %v2245
      %v2290 = vmul.f32 %v2098, %v2247
      %v2291 = vmul.f32 %v2099, %v2249
      %v2292 = vmul.f32 %v2100, %v2251
      %v2293 = vmul.f32 %v2101, %v2253
      %v2294 = vmul.f32 %v2102, %v2255
      %v2295 = vmul.f32 %v2103, %v2257
      %v2296 = vmul.f32 %v2104, %v2259
      %v2297 = vmul.f32 %v2105, %v2261
      %v2298 = vmul.f32 %v2106, %v2263
      %v2299 = vmul.f32 %v2107, %v2265
      %v2300 = vmul.f32 %v2108, %v2267
      %v2301 = vmul.f32 %v2109, %v2269
      %2318 = vrot.lane.b32.xlu0 %v1951, 127
      %v2319 = vpop.permute.xlu0 %2318
      %2320 = vrot.lane.b32.xlu0 %v1953, 127
      %v2321 = vpop.permute.xlu0 %2320
      %2322 = vrot.lane.b32.xlu0 %v1955, 127
      %v2323 = vpop.permute.xlu0 %2322
      %2324 = vrot.lane.b32.xlu0 %v1957, 127
      %v2325 = vpop.permute.xlu0 %2324
      %2326 = vrot.lane.b32.xlu0 %v1959, 127
      %v2327 = vpop.permute.xlu0 %2326
      %2328 = vrot.lane.b32.xlu0 %v1961, 127
      %v2329 = vpop.permute.xlu0 %2328
      %2330 = vrot.lane.b32.xlu0 %v1963, 127
      %v2331 = vpop.permute.xlu0 %2330
      %2332 = vrot.lane.b32.xlu0 %v1965, 127
      %v2333 = vpop.permute.xlu0 %2332
      %2334 = vrot.lane.b32.xlu0 %v1967, 127
      %v2335 = vpop.permute.xlu0 %2334
      %2336 = vrot.lane.b32.xlu0 %v1969, 127
      %v2337 = vpop.permute.xlu0 %2336
      %2338 = vrot.lane.b32.xlu0 %v1971, 127
      %v2339 = vpop.permute.xlu0 %2338
      %2340 = vrot.lane.b32.xlu0 %v1973, 127
      %v2341 = vpop.permute.xlu0 %2340
      %2342 = vrot.lane.b32.xlu0 %v1975, 127
      %v2343 = vpop.permute.xlu0 %2342
      %2344 = vrot.lane.b32.xlu0 %v1977, 127
      %v2345 = vpop.permute.xlu0 %2344
      %2346 = vrot.lane.b32.xlu0 %v1979, 127
      %v2347 = vpop.permute.xlu0 %2346
      %2348 = vrot.lane.b32.xlu0 %v1981, 127
      %v2349 = vpop.permute.xlu0 %2348
      %v2366 = vmul.f32 %v2206, %v2319
      %v2367 = vmul.f32 %v2207, %v2321
      %v2368 = vmul.f32 %v2208, %v2323
      %v2369 = vmul.f32 %v2209, %v2325
      %v2370 = vmul.f32 %v2210, %v2327
      %v2371 = vmul.f32 %v2211, %v2329
      %v2372 = vmul.f32 %v2212, %v2331
      %v2373 = vmul.f32 %v2213, %v2333
      %v2374 = vmul.f32 %v2214, %v2335
      %v2375 = vmul.f32 %v2215, %v2337
      %v2376 = vmul.f32 %v2216, %v2339
      %v2377 = vmul.f32 %v2217, %v2341
      %v2378 = vmul.f32 %v2218, %v2343
      %v2379 = vmul.f32 %v2219, %v2345
      %v2380 = vmul.f32 %v2220, %v2347
      %v2381 = vmul.f32 %v2221, %v2349
      %v2382 = vadd.f32 %v2286, %v2366
      %v2383 = vadd.f32 %v2287, %v2367
      %v2384 = vadd.f32 %v2288, %v2368
      %v2385 = vadd.f32 %v2289, %v2369
      %v2386 = vadd.f32 %v2290, %v2370
      %v2387 = vadd.f32 %v2291, %v2371
      %v2388 = vadd.f32 %v2292, %v2372
      %v2389 = vadd.f32 %v2293, %v2373
      %v2390 = vadd.f32 %v2294, %v2374
      %v2391 = vadd.f32 %v2295, %v2375
      %v2392 = vadd.f32 %v2296, %v2376
      %v2393 = vadd.f32 %v2297, %v2377
      %v2394 = vadd.f32 %v2298, %v2378
      %v2395 = vadd.f32 %v2299, %v2379
      %v2396 = vadd.f32 %v2300, %v2380
      %v2397 = vadd.f32 %v2301, %v2381
      %v2398 = vlaneseq
      %v2399 = vand.u32 %v2398, 127
      %vm2400 = vcmp.eq.s32.totalorder %v2399, 2
      %2402 = vset.pattern.permute.xlu0 0
      %2403 = vperm.xlu0 %2402, %v2382
      %v2404 = vpop.permute.xlu0 %2403
      %2407 = vset.pattern.permute.xlu0 0
      %2408 = vperm.xlu0 %2407, %v2383
      %v2409 = vpop.permute.xlu0 %2408
      %2412 = vset.pattern.permute.xlu0 0
      %2413 = vperm.xlu0 %2412, %v2384
      %v2414 = vpop.permute.xlu0 %2413
      %2417 = vset.pattern.permute.xlu0 0
      %2418 = vperm.xlu0 %2417, %v2385
      %v2419 = vpop.permute.xlu0 %2418
      %2422 = vset.pattern.permute.xlu0 0
      %2423 = vperm.xlu0 %2422, %v2386
      %v2424 = vpop.permute.xlu0 %2423
      %2427 = vset.pattern.permute.xlu0 0
      %2428 = vperm.xlu0 %2427, %v2387
      %v2429 = vpop.permute.xlu0 %2428
      %2432 = vset.pattern.permute.xlu0 0
      %2433 = vperm.xlu0 %2432, %v2388
      %v2434 = vpop.permute.xlu0 %2433
      %2437 = vset.pattern.permute.xlu0 0
      %2438 = vperm.xlu0 %2437, %v2389
      %v2439 = vpop.permute.xlu0 %2438
      %2442 = vset.pattern.permute.xlu0 0
      %2443 = vperm.xlu0 %2442, %v2390
      %v2444 = vpop.permute.xlu0 %2443
      %2447 = vset.pattern.permute.xlu0 0
      %2448 = vperm.xlu0 %2447, %v2391
      %v2449 = vpop.permute.xlu0 %2448
      %2452 = vset.pattern.permute.xlu0 0
      %2453 = vperm.xlu0 %2452, %v2392
      %v2454 = vpop.permute.xlu0 %2453
      %2457 = vset.pattern.permute.xlu0 0
      %2458 = vperm.xlu0 %2457, %v2393
      %v2459 = vpop.permute.xlu0 %2458
      %2462 = vset.pattern.permute.xlu0 0
      %2463 = vperm.xlu0 %2462, %v2394
      %v2464 = vpop.permute.xlu0 %2463
      %2467 = vset.pattern.permute.xlu0 0
      %2468 = vperm.xlu0 %2467, %v2395
      %v2469 = vpop.permute.xlu0 %2468
      %2472 = vset.pattern.permute.xlu0 0
      %2473 = vperm.xlu0 %2472, %v2396
      %v2474 = vpop.permute.xlu0 %2473
      %2477 = vset.pattern.permute.xlu0 0
      %2478 = vperm.xlu0 %2477, %v2397
      %v2479 = vpop.permute.xlu0 %2478
      %v2481 = vsel %vm2400, %v2404, %v906
      %v2482 = vsel %vm2400, %v2409, %v911
      %v2483 = vsel %vm2400, %v2414, %v916
      %v2484 = vsel %vm2400, %v2419, %v921
      %v2485 = vsel %vm2400, %v2424, %v926
      %v2486 = vsel %vm2400, %v2429, %v931
      %v2487 = vsel %vm2400, %v2434, %v936
      %v2488 = vsel %vm2400, %v2439, %v941
      %v2489 = vsel %vm2400, %v2444, %v946
      %v2490 = vsel %vm2400, %v2449, %v951
      %v2491 = vsel %vm2400, %v2454, %v956
      %v2492 = vsel %vm2400, %v2459, %v961
      %v2493 = vsel %vm2400, %v2464, %v966
      %v2494 = vsel %vm2400, %v2469, %v971
      %v2495 = vsel %vm2400, %v2474, %v976
      %v2496 = vsel %vm2400, %v2479, %v981
      %vm2497 = vcmp.eq.s32.totalorder %v2399, 3
      %2499 = vset.pattern.permute.xlu0 0
      %2500 = vperm.xlu0 %2499, %v2094
      %v2501 = vpop.permute.xlu0 %2500
      %2504 = vset.pattern.permute.xlu0 0
      %2505 = vperm.xlu0 %2504, %v2095
      %v2506 = vpop.permute.xlu0 %2505
      %2509 = vset.pattern.permute.xlu0 0
      %2510 = vperm.xlu0 %2509, %v2096
      %v2511 = vpop.permute.xlu0 %2510
      %2514 = vset.pattern.permute.xlu0 0
      %2515 = vperm.xlu0 %2514, %v2097
      %v2516 = vpop.permute.xlu0 %2515
      %2519 = vset.pattern.permute.xlu0 0
      %2520 = vperm.xlu0 %2519, %v2098
      %v2521 = vpop.permute.xlu0 %2520
      %2524 = vset.pattern.permute.xlu0 0
      %2525 = vperm.xlu0 %2524, %v2099
      %v2526 = vpop.permute.xlu0 %2525
      %2529 = vset.pattern.permute.xlu0 0
      %2530 = vperm.xlu0 %2529, %v2100
      %v2531 = vpop.permute.xlu0 %2530
      %2534 = vset.pattern.permute.xlu0 0
      %2535 = vperm.xlu0 %2534, %v2101
      %v2536 = vpop.permute.xlu0 %2535
      %2539 = vset.pattern.permute.xlu0 0
      %2540 = vperm.xlu0 %2539, %v2102
      %v2541 = vpop.permute.xlu0 %2540
      %2544 = vset.pattern.permute.xlu0 0
      %2545 = vperm.xlu0 %2544, %v2103
      %v2546 = vpop.permute.xlu0 %2545
      %2549 = vset.pattern.permute.xlu0 0
      %2550 = vperm.xlu0 %2549, %v2104
      %v2551 = vpop.permute.xlu0 %2550
      %2554 = vset.pattern.permute.xlu0 0
      %2555 = vperm.xlu0 %2554, %v2105
      %v2556 = vpop.permute.xlu0 %2555
      %2559 = vset.pattern.permute.xlu0 0
      %2560 = vperm.xlu0 %2559, %v2106
      %v2561 = vpop.permute.xlu0 %2560
      %2564 = vset.pattern.permute.xlu0 0
      %2565 = vperm.xlu0 %2564, %v2107
      %v2566 = vpop.permute.xlu0 %2565
      %2569 = vset.pattern.permute.xlu0 0
      %2570 = vperm.xlu0 %2569, %v2108
      %v2571 = vpop.permute.xlu0 %2570
      %2574 = vset.pattern.permute.xlu0 0
      %2575 = vperm.xlu0 %2574, %v2109
      %v2576 = vpop.permute.xlu0 %2575
      %v2578 = vsel %vm2497, %v2501, %v2481
      %v2579 = vsel %vm2497, %v2506, %v2482
      %v2580 = vsel %vm2497, %v2511, %v2483
      %v2581 = vsel %vm2497, %v2516, %v2484
      %v2582 = vsel %vm2497, %v2521, %v2485
      %v2583 = vsel %vm2497, %v2526, %v2486
      %v2584 = vsel %vm2497, %v2531, %v2487
      %v2585 = vsel %vm2497, %v2536, %v2488
      %v2586 = vsel %vm2497, %v2541, %v2489
      %v2587 = vsel %vm2497, %v2546, %v2490
      %v2588 = vsel %vm2497, %v2551, %v2491
      %v2589 = vsel %vm2497, %v2556, %v2492
      %v2590 = vsel %vm2497, %v2561, %v2493
      %v2591 = vsel %vm2497, %v2566, %v2494
      %v2592 = vsel %vm2497, %v2571, %v2495
      %v2593 = vsel %vm2497, %v2576, %v2496
      %vm2594 = vcmp.eq.s32.totalorder %v2399, 4
      %2596 = vset.pattern.permute.xlu0 0
      %2597 = vperm.xlu0 %2596, %v2206
      %v2598 = vpop.permute.xlu0 %2597
      %2601 = vset.pattern.permute.xlu0 0
      %2602 = vperm.xlu0 %2601, %v2207
      %v2603 = vpop.permute.xlu0 %2602
      %2606 = vset.pattern.permute.xlu0 0
      %2607 = vperm.xlu0 %2606, %v2208
      %v2608 = vpop.permute.xlu0 %2607
      %2611 = vset.pattern.permute.xlu0 0
      %2612 = vperm.xlu0 %2611, %v2209
      %v2613 = vpop.permute.xlu0 %2612
      %2616 = vset.pattern.permute.xlu0 0
      %2617 = vperm.xlu0 %2616, %v2210
      %v2618 = vpop.permute.xlu0 %2617
      %2621 = vset.pattern.permute.xlu0 0
      %2622 = vperm.xlu0 %2621, %v2211
      %v2623 = vpop.permute.xlu0 %2622
      %2626 = vset.pattern.permute.xlu0 0
      %2627 = vperm.xlu0 %2626, %v2212
      %v2628 = vpop.permute.xlu0 %2627
      %2631 = vset.pattern.permute.xlu0 0
      %2632 = vperm.xlu0 %2631, %v2213
      %v2633 = vpop.permute.xlu0 %2632
      %2636 = vset.pattern.permute.xlu0 0
      %2637 = vperm.xlu0 %2636, %v2214
      %v2638 = vpop.permute.xlu0 %2637
      %2641 = vset.pattern.permute.xlu0 0
      %2642 = vperm.xlu0 %2641, %v2215
      %v2643 = vpop.permute.xlu0 %2642
      %2646 = vset.pattern.permute.xlu0 0
      %2647 = vperm.xlu0 %2646, %v2216
      %v2648 = vpop.permute.xlu0 %2647
      %2651 = vset.pattern.permute.xlu0 0
      %2652 = vperm.xlu0 %2651, %v2217
      %v2653 = vpop.permute.xlu0 %2652
      %2656 = vset.pattern.permute.xlu0 0
      %2657 = vperm.xlu0 %2656, %v2218
      %v2658 = vpop.permute.xlu0 %2657
      %2661 = vset.pattern.permute.xlu0 0
      %2662 = vperm.xlu0 %2661, %v2219
      %v2663 = vpop.permute.xlu0 %2662
      %2666 = vset.pattern.permute.xlu0 0
      %2667 = vperm.xlu0 %2666, %v2220
      %v2668 = vpop.permute.xlu0 %2667
      %2671 = vset.pattern.permute.xlu0 0
      %2672 = vperm.xlu0 %2671, %v2221
      %v2673 = vpop.permute.xlu0 %2672
      %v2675 = vsel %vm2594, %v2598, %v2578
      %v2676 = vsel %vm2594, %v2603, %v2579
      %v2677 = vsel %vm2594, %v2608, %v2580
      %v2678 = vsel %vm2594, %v2613, %v2581
      %v2679 = vsel %vm2594, %v2618, %v2582
      %v2680 = vsel %vm2594, %v2623, %v2583
      %v2681 = vsel %vm2594, %v2628, %v2584
      %v2682 = vsel %vm2594, %v2633, %v2585
      %v2683 = vsel %vm2594, %v2638, %v2586
      %v2684 = vsel %vm2594, %v2643, %v2587
      %v2685 = vsel %vm2594, %v2648, %v2588
      %v2686 = vsel %vm2594, %v2653, %v2589
      %v2687 = vsel %vm2594, %v2658, %v2590
      %v2688 = vsel %vm2594, %v2663, %v2591
      %v2689 = vsel %vm2594, %v2668, %v2592
      %v2690 = vsel %vm2594, %v2673, %v2593
      %2691 = vst [vmem:[%s145] sm:$0xff] %v2675
      %2692 = vst [vmem:[%s145 + $0x8] sm:$0xff] %v2676
      %2693 = vst [vmem:[%s145 + $0x10] sm:$0xff] %v2677
      %2694 = vst [vmem:[%s145 + $0x18] sm:$0xff] %v2678
      %2695 = vst [vmem:[%s145 + $0x20] sm:$0xff] %v2679
      %2696 = vst [vmem:[%s145 + $0x28] sm:$0xff] %v2680
      %2697 = vst [vmem:[%s145 + $0x30] sm:$0xff] %v2681
      %2698 = vst [vmem:[%s145 + $0x38] sm:$0xff] %v2682
      %2699 = vst [vmem:[%s145 + $0x40] sm:$0xff] %v2683
      %2700 = vst [vmem:[%s145 + $0x48] sm:$0xff] %v2684
      %2701 = vst [vmem:[%s145 + $0x50] sm:$0xff] %v2685
      %2702 = vst [vmem:[%s145 + $0x58] sm:$0xff] %v2686
      %2703 = vst [vmem:[%s145 + $0x60] sm:$0xff] %v2687
      %2704 = vst [vmem:[%s145 + $0x68] sm:$0xff] %v2688
      %2705 = vst [vmem:[%s145 + $0x70] sm:$0xff] %v2689
      %2706 = vst [vmem:[%s145 + $0x78] sm:$0xff] %v2690
      %s2707 = smul.u32 16, %s13
      %p2708 = scmp.lt.s32.totalorder %s2707, 31
      %s2709 = scalar_select %p2708, %s2707, 31
      %s2710 = smul.addr %s2709, 8
      %s2711 = scalar_lea.vmem %s2, %s2710
      // Predicated region
      $region29: #{onesiv_forward.1} parent=27 // pred_check
        %p2712 = pneg %p78
      $region30: #{onesiv_forward.1} parent=27 // pred_check_branch
        %2714 = sbr.rel (%p2712) target = $region32
      $region31: #{onesiv_forward.1} parent=27 // pred_region
        %s2715 = smul.u32 16, %s13
      $region32: #{onesiv_forward.1} parent=27 // pred_fallthru
        _
    $region28: #{onesiv_forward.1} parent=5 // pred_fallthru
      _
    %p2716 = scmp.le.s32.totalorder 2, %s8
    // Predicated region
    $region33: #{onesiv_forward.1} parent=5 // pred_check
      %p2717 = pneg %p2716
    $region34: #{onesiv_forward.1} parent=5 // pred_check_branch
      %2719 = sbr.rel (%p2717) target = $region36
    $region35: #{onesiv_forward.1} parent=5 // pred_region
      %s2720 = ssub.s32 %s8, 2
      // Predicated region
      $region37: #{onesiv_forward.1} parent=35 // pred_check
        %p2721 = pneg %p84
      $region38: #{onesiv_forward.1} parent=35 // pred_check_branch
        %2723 = sbr.rel (%p2721) target = $region40
      $region39: #{onesiv_forward.1} parent=35 // pred_region
        %s2724 = smul.u32 16, %s14
        %p2725 = scmp.lt.s32.totalorder %s2724, 31
        %s2726 = scalar_select %p2725, %s2724, 31
        %s2727 = smul.addr %s2726, 8
        %s2728 = scalar_lea.vmem %s2, %s2727
      $region40: #{onesiv_forward.1} parent=35 // pred_fallthru
        _
    $region36: #{onesiv_forward.1} parent=5 // pred_fallthru
      _
  $region6: #{onesiv_forward.1} parent=0 // loop_footer
    %s12 = sadd.s32 1, %s8
  $region7: #{onesiv_forward.1} parent=0 // loop_footer_branch
    %7 = sbr.rel target = $region3
  $region8: #{onesiv_forward.1} parent=0 // loop_exit
    _

</llo_original>
